<compile_context>
chip_gen: v7x
topology: tpu7x:2x2x1
jax: 0.10.0
libtpu: 0.0.40
codegen_flags: <defaults>
</compile_context>

<pallas_src>
import functools
import numpy as np
import jax
import jax.numpy as jnp
from jax.experimental import pallas as pl
from jax.experimental.pallas import tpu as pltpu


# ----------------------------- Pallas kernels -----------------------------

def _matmul_bias_act_kernel(x_ref, w_ref, b_ref, o_ref, *, apply_relu):
    """out = maybe_relu(X @ W + b); W is bf16, accumulate in f32 on the MXU."""
    y = jnp.dot(x_ref[...].astype(jnp.bfloat16), w_ref[...],
                preferred_element_type=jnp.float32)
    y = y + b_ref[...]
    if apply_relu:
        y = jnp.maximum(y, 0.0)
    o_ref[...] = y


def matmul_bias_act(x, w_bf16, b, *, apply_relu):
    M, K = x.shape
    Kw, N = w_bf16.shape
    assert K == Kw
    kernel = functools.partial(_matmul_bias_act_kernel, apply_relu=apply_relu)
    return pl.pallas_call(
        kernel,
        out_shape=jax.ShapeDtypeStruct((M, N), jnp.float32),
        grid=(1,),
        in_specs=[
            pl.BlockSpec((M, K), lambda i: (0, 0)),
            pl.BlockSpec((K, N), lambda i: (0, 0)),
            pl.BlockSpec((1, N), lambda i: (0, 0)),
        ],
        out_specs=pl.BlockSpec((M, N), lambda i: (0, 0)),
        compiler_params=pltpu.CompilerParams(
            dimension_semantics=("arbitrary",),
            vmem_limit_bytes=32 * 1024 * 1024,
        ),
    )(x, w_bf16, b)


def _fc1_kernel(x_ref, w_ref, b_ref, o_ref, acc_ref):
    """Weight-streaming fc1: K tiled on the last (arbitrary) grid axis, N split on the
    first (parallel) grid axis so multi-TC parts (v7x) stream half the weight per core."""
    @pl.when(pl.program_id(1) == 0)
    def _():
        acc_ref[...] = jnp.zeros_like(acc_ref)

    acc_ref[...] += jnp.dot(x_ref[...].astype(jnp.bfloat16), w_ref[...],
                            preferred_element_type=jnp.float32)

    @pl.when(pl.program_id(1) == pl.num_programs(1) - 1)
    def _():
        o_ref[...] = jnp.maximum(acc_ref[...] + b_ref[...], 0.0)


def fc1_matmul(x, w_bf16, b, *, n_blocks=2, k_blocks=6):
    M, K = x.shape
    Kw, N = w_bf16.shape
    assert K == Kw and K % k_blocks == 0 and N % n_blocks == 0
    tk = K // k_blocks                 # 38400 / 6 = 6400  (multiple of 128)
    tn = N // n_blocks                 # 512 / 2 = 256
    return pl.pallas_call(
        _fc1_kernel,
        out_shape=jax.ShapeDtypeStruct((M, N), jnp.float32),
        grid=(n_blocks, k_blocks),
        in_specs=[
            pl.BlockSpec((M, tk), lambda j, k: (0, k)),
            pl.BlockSpec((tk, tn), lambda j, k: (k, j)),
            pl.BlockSpec((1, tn), lambda j, k: (0, j)),
        ],
        out_specs=pl.BlockSpec((M, tn), lambda j, k: (0, j)),
        scratch_shapes=[pltpu.VMEM((M, tn), jnp.float32)],
        compiler_params=pltpu.CompilerParams(
            dimension_semantics=("parallel", "arbitrary"),
            vmem_limit_bytes=24 * 1024 * 1024,   # ~7 MiB actually needed; well under v7x VMEM
        ),
    )(x, w_bf16, b)


def _fc23_kernel(x_ref, w2_ref, b2_ref, w3_ref, b3_ref, o_ref):
    """Fused fc2(+BN+ReLU) and fc3; the (B,512) hidden activation never leaves VMEM."""
    h = jnp.dot(x_ref[...].astype(jnp.bfloat16), w2_ref[...],
                preferred_element_type=jnp.float32) + b2_ref[...]
    h = jnp.maximum(h, 0.0)
    o_ref[...] = jnp.dot(h.astype(jnp.bfloat16), w3_ref[...],
                         preferred_element_type=jnp.float32) + b3_ref[...]


def fc23_fused(x, w2, b2, w3, b3):
    M, K = x.shape
    _, H = w2.shape
    _, N = w3.shape
    return pl.pallas_call(
        _fc23_kernel,
        out_shape=jax.ShapeDtypeStruct((M, N), jnp.float32),
        grid=(1,),
        in_specs=[
            pl.BlockSpec((M, K), lambda i: (0, 0)),
            pl.BlockSpec((K, H), lambda i: (0, 0)),
            pl.BlockSpec((1, H), lambda i: (0, 0)),
            pl.BlockSpec((H, N), lambda i: (0, 0)),
            pl.BlockSpec((1, N), lambda i: (0, 0)),
        ],
        out_specs=pl.BlockSpec((M, N), lambda i: (0, 0)),
    )(x, w2, b2, w3, b3)


def _diffuseness_mask_kernel(r1_ref, i1_ref, r2_ref, i2_ref, nc_ref,
                             m1r_ref, m1i_ref, m2r_ref, m2i_ref, *, threshold):
    """Coherent-to-diffuse-ratio mask on a lane-dense (B, F*T) layout."""
    r1 = r1_ref[...]; i1 = i1_ref[...]
    r2 = r2_ref[...]; i2 = i2_ref[...]
    nc = nc_ref[...]                   # (1, F*T) -> broadcasts over batch

    # cross / auto power spectra
    cr = r1 * r2 + i1 * i2
    ci = i1 * r2 - r1 * i2
    a1 = r1 * r1 + i1 * i1
    a2 = r2 * r2 + i2 * i2

    denom = jnp.sqrt(a1 * a2) + 1e-10
    scr = cr / denom
    sci = ci / denom
    real_sc = scr
    abs_sq = scr * scr + sci * sci
    nc2 = nc * nc

    corr_arg = (nc2 * real_sc * real_sc - nc2 * abs_sq + nc2
                - 2.0 * nc * real_sc + abs_sq)
    # discriminant is >= 0 mathematically; clamp fp-rounding negatives to avoid NaN
    correction = jnp.sqrt(jnp.maximum(corr_arg, 0.0))
    numerator = nc * real_sc - abs_sq - correction
    denominator = abs_sq - 1.0
    cdr = numerator / (denominator + 1e-10)
    diffuseness = 1.0 / (cdr + 1.0)
    mask = (diffuseness < threshold).astype(jnp.float32)

    m1r_ref[...] = r1 * mask
    m1i_ref[...] = i1 * mask
    m2r_ref[...] = r2 * mask
    m2i_ref[...] = i2 * mask


def _phat_weight_kernel(gr_ref, gi_ref, beta_ref, or_ref, oi_ref, *, eps):
    """out[:, i, :] = Gxy * (1/(|Gxy|+eps))**beta[i] -- all betas vectorized."""
    gr = gr_ref[...]                               # (B, F)
    gi = gi_ref[...]
    mag = jnp.sqrt(gr * gr + gi * gi)
    log_phi = -jnp.log(mag + eps)                  # log(1/(|G|+eps)), (B, F)
    beta = beta_ref[...]                           # (1, nb, 1)
    w = jnp.exp(beta * log_phi[:, None, :])        # (B, nb, F)
    or_ref[...] = gr[:, None, :] * w
    oi_ref[...] = gi[:, None, :] * w


# ----------------------------- JAX glue (FFT / framing) -----------------------------

def stft(x, n_fft=512, hop=256):
    # torch.stft(center=True, window=ones, onesided) equivalent. x: (B, T)
    pad = n_fft // 2
    xp = jnp.pad(x, ((0, 0), (pad, pad)), mode="reflect")
    n_frames = 1 + (xp.shape[1] - n_fft) // hop
    idx = np.arange(n_frames)[:, None] * hop + np.arange(n_fft)[None, :]
    frames = xp[:, idx]                        # (B, frames, n_fft)
    spec = jnp.fft.rfft(frames, axis=-1)       # (B, frames, F)
    return jnp.transpose(spec, (0, 2, 1))      # (B, F, frames)


def istft(spec, n_fft=512, hop=256):
    # torch.istft(center=True, window=ones) equivalent. spec: (B, F, frames)
    frames = jnp.fft.irfft(jnp.transpose(spec, (0, 2, 1)), n=n_fft, axis=-1)  # (B, T, n_fft)
    B, T, _ = frames.shape
    full = n_fft + hop * (T - 1)
    y = jnp.zeros((B, full), jnp.float32)
    env = np.zeros((full,), np.float32)
    for t in range(T):
        y = y.at[:, t * hop: t * hop + n_fft].add(frames[:, t, :])
        env[t * hop: t * hop + n_fft] += 1.0
    y = y / env[None, :]
    pad = n_fft // 2
    return y[:, pad: pad + hop * (T - 1)]


def diffuseness_mask(x1, x2, threshold=0.2, n_fft=512, hop=256, d=0.5, c=343.0):
    x1 = x1[:, 0, :]
    x2 = x2[:, 0, :]
    S1 = stft(x1, n_fft, hop)
    S2 = stft(x2, n_fft, hop)
    B, F, T = S1.shape
    FT = F * T

    fs = 2 * (F - 1)
    f_k = np.linspace(0.0, fs / 2.0, F).astype(np.float32)
    arg = 2.0 * np.pi * f_k * d / c
    nc = np.abs(np.sin(arg) / (arg + 1e-10)).astype(np.float32)           # (F,)
    nc_flat = jnp.asarray(np.broadcast_to(nc[:, None], (F, T)).reshape(1, FT))

    r1 = jnp.real(S1).astype(jnp.float32).reshape(B, FT)
    i1 = jnp.imag(S1).astype(jnp.float32).reshape(B, FT)
    r2 = jnp.real(S2).astype(jnp.float32).reshape(B, FT)
    i2 = jnp.imag(S2).astype(jnp.float32).reshape(B, FT)

    kernel = functools.partial(_diffuseness_mask_kernel, threshold=threshold)
    shape2 = jax.ShapeDtypeStruct((B, FT), jnp.float32)
    spec_b = pl.BlockSpec((B, FT), lambda i: (0, 0))
    spec_n = pl.BlockSpec((1, FT), lambda i: (0, 0))
    m1r, m1i, m2r, m2i = pl.pallas_call(
        kernel,
        out_shape=(shape2, shape2, shape2, shape2),
        grid=(1,),
        in_specs=[spec_b, spec_b, spec_b, spec_b, spec_n],
        out_specs=(spec_b, spec_b, spec_b, spec_b),
    )(r1, i1, r2, i2, nc_flat)

    M1 = jax.lax.complex(m1r.reshape(B, F, T), m1i.reshape(B, F, T))
    M2 = jax.lax.complex(m2r.reshape(B, F, T), m2i.reshape(B, F, T))
    return istft(M1, n_fft, hop), istft(M2, n_fft, hop)


def gcc_phat_beta(x1, x2, betas, max_tau=42, eps=1e-3):
    # x1, x2: (B, 1, T)
    n = x1.shape[-1] + x2.shape[-1]
    X = jnp.fft.rfft(x1, n=n, axis=-1)
    Y = jnp.fft.rfft(x2, n=n, axis=-1)
    Gxy = X * jnp.conj(Y)                     # (B, 1, F)
    B = Gxy.shape[0]
    F = Gxy.shape[-1]
    gr = jnp.real(Gxy)[:, 0, :].astype(jnp.float32)
    gi = jnp.imag(Gxy)[:, 0, :].astype(jnp.float32)
    nb = len(betas)
    beta_arr = jnp.asarray(np.asarray(betas, np.float32).reshape(1, nb, 1))

    kernel = functools.partial(_phat_weight_kernel, eps=eps)
    out_sd = jax.ShapeDtypeStruct((B, nb, F), jnp.float32)
    spec2 = pl.BlockSpec((B, F), lambda i: (0, 0))
    specb = pl.BlockSpec((1, nb, 1), lambda i: (0, 0, 0))
    spec3 = pl.BlockSpec((B, nb, F), lambda i: (0, 0, 0))
    wr, wi = pl.pallas_call(
        kernel,
        out_shape=(out_sd, out_sd),
        grid=(1,),
        in_specs=[spec2, spec2, specb],
        out_specs=(spec3, spec3),
    )(gr, gi, beta_arr)

    spec = jax.lax.complex(wr, wi)            # (B, nb, F)
    cc = jnp.fft.irfft(spec, n=n, axis=-1)    # (B, nb, n)
    max_shift = int(min(max_tau, n // 2))
    cc = jnp.concatenate([cc[:, :, -max_shift:], cc[:, :, : max_shift + 1]], axis=-1)
    return cc                                  # (B, nb, 2*max_tau+1)


# ----------------------------- conv stack (NHWC, padded channels) -----------------------------

def conv_layer_nhwc(x_nhwc, wm_bf16, b):
    """3x3 valid conv + folded BN + ReLU as an im2col matmul. x: (B,H,W,C) NHWC."""
    B, H, W, C = x_nhwc.shape
    Ho, Wo = H - 2, W - 2
    patches = [x_nhwc[:, i:i + Ho, j:j + Wo, :] for i in range(3) for j in range(3)]
    cols = jnp.stack(patches, axis=-1).reshape(B * Ho * Wo, C * 9)  # (M, Cin*9), Cin-outer
    Kw = wm_bf16.shape[0]
    if cols.shape[1] < Kw:                     # conv1: pad degenerate K=9 up to 128 lanes
        cols = jnp.pad(cols, ((0, 0), (0, Kw - cols.shape[1])))
    y = matmul_bias_act(cols, wm_bf16, b, apply_relu=True)           # (M, Cout_padded)
    return y.reshape(B, Ho, Wo, wm_bf16.shape[1])


# ----------------------------- params -----------------------------

def init_params(key, max_tau=42):
    keys = jax.random.split(key, 16)
    p = {}
    conv_dims = [(1, 32), (32, 64), (64, 128), (128, 256), (256, 512)]
    ki = 0
    for li, (cin, cout) in enumerate(conv_dims, start=1):
        p[f"conv{li}_w"] = 0.05 * jax.random.normal(keys[ki], (cout, cin, 3, 3), jnp.float32); ki += 1
        p[f"conv{li}_b"] = 0.05 * jax.random.normal(keys[ki], (cout,), jnp.float32); ki += 1
    feat = 512 * (2 * max_tau + 1 - 10)        # 512 * 75 = 38400
    fc_dims = [(feat, 512), (512, 512), (512, 1)]
    for li, (din, dout) in enumerate(fc_dims, start=1):
        p[f"fc{li}_w"] = 0.02 * jax.random.normal(keys[ki], (din, dout), jnp.float32); ki += 1
        p[f"fc{li}_b"] = 0.02 * jax.random.normal(keys[ki], (dout,), jnp.float32); ki += 1
    return p


def prepare_params(params, bn_eps=1e-5):
    """Host-side prep: fold eval-mode BN into W/b, pad conv channels for lane-dense matmuls,
    cast all weights to bf16 (f32 biases, f32 MXU accumulation in-kernel)."""
    s_bn = np.float32(1.0 / np.sqrt(1.0 + bn_eps))   # BN eval: gamma=1, beta=0, mean=0, var=1
    prep = {}
    # target (padded) input / output channel counts per conv layer
    cin_tgt = [1, 128, 128, 128, 256]
    cout_tgt = [128, 128, 128, 256, 512]
    for li in range(1, 6):
        w = params[f"conv{li}_w"]                    # (cout, cin, 3, 3)
        b = params[f"conv{li}_b"]                    # (cout,)
        cout, cin = w.shape[0], w.shape[1]
        ct, kt = cout_tgt[li - 1], cin_tgt[li - 1]
        w = jnp.pad(w, ((0, ct - cout), (0, kt - cin), (0, 0), (0, 0)))
        b = jnp.pad(b, ((0, ct - cout),))
        wm = w.reshape(ct, kt * 9).T                 # (Cin*9, Cout), Cin-outer (matches im2col)
        if li == 1:                                  # pad K=9 -> 128 for lane-dense loads
            wm = jnp.pad(wm, ((0, 128 - wm.shape[0]), (0, 0)))
        prep[f"conv{li}_w"] = (wm * s_bn).astype(jnp.bfloat16)
        prep[f"conv{li}_b"] = (b * s_bn).reshape(1, -1).astype(jnp.float32)
    for li, has_bn in [(1, True), (2, True), (3, False)]:
        w = params[f"fc{li}_w"]
        b = params[f"fc{li}_b"]
        sc = s_bn if has_bn else np.float32(1.0)
        prep[f"fc{li}_w"] = (w * sc).astype(jnp.bfloat16)
        prep[f"fc{li}_b"] = (b * sc).reshape(1, -1).astype(jnp.float32)
    return prep


# ----------------------------- forward -----------------------------

def pgccphat_forward(prep, x1, x2, betas, max_tau=42):
    B = x1.shape[0]
    x1f, x2f = diffuseness_mask(x1, x2)                                   # (B, T) each
    cc = gcc_phat_beta(x1f[:, None, :], x2f[:, None, :], betas, max_tau)  # (B, 11, 85)

    x = cc[:, :, :, None]                                                 # NHWC (B, 11, 85, 1)
    for li in range(1, 6):
        x = conv_layer_nhwc(x, prep[f"conv{li}_w"], prep[f"conv{li}_b"])
    # conv5 output: (B, 1, 75, 512) NHWC; apply PyTorch NCHW flatten order once.
    feat = jnp.transpose(x[:, 0, :, :], (0, 2, 1)).reshape(B, -1)         # (B, 512*75)

    # fc1 + BN1d + ReLU (dropout = identity in eval): weight-streaming kernel
    y = fc1_matmul(feat, prep["fc1_w"], prep["fc1_b"], n_blocks=2, k_blocks=6)
    # fc2 + BN1d + ReLU  and  fc3 (regression head) fused in one kernel
    y = fc23_fused(y, prep["fc2_w"], prep["fc2_b"], prep["fc3_w"], prep["fc3_b"])
    return jnp.squeeze(y)                                                 # (B,)


if __name__ == "__main__":
    key = jax.random.PRNGKey(0)
    kp, k1, k2 = jax.random.split(key, 3)
    params = init_params(kp)
    prep = prepare_params(params)

    B, T = 2, 2048
    x1 = jax.random.normal(k1, (B, 1, T), jnp.float32)
    x2 = jax.random.normal(k2, (B, 1, T), jnp.float32)

    betas = np.arange(0, 1.1, 0.1)
    assert betas.shape[0] == 11

    out = pgccphat_forward(prep, x1, x2, betas)
    out = jax.block_until_ready(out)
    assert out.shape == (B,)
    print("KERNEL_OK")
</pallas_src>

<mosaic_0001>
module attributes {stable_mosaic.version = 11 : i64} {
  func.func @_diffuseness_mask_kernel(%arg0: i32, %arg1: memref<2x2313xf32, #tpu.memory_space<vmem>>, %arg2: memref<2x2313xf32, #tpu.memory_space<vmem>>, %arg3: memref<2x2313xf32, #tpu.memory_space<vmem>>, %arg4: memref<2x2313xf32, #tpu.memory_space<vmem>>, %arg5: memref<1x2313xf32, #tpu.memory_space<vmem>>, %arg6: memref<2x2313xf32, #tpu.memory_space<vmem>>, %arg7: memref<2x2313xf32, #tpu.memory_space<vmem>>, %arg8: memref<2x2313xf32, #tpu.memory_space<vmem>>, %arg9: memref<2x2313xf32, #tpu.memory_space<vmem>>) attributes {dimension_semantics = [#tpu.dimension_semantics<arbitrary>], iteration_bounds = array<i64: 1>, scalar_prefetch = 0 : i64, scratch_operands = 0 : i64, tpu.core_type = #tpu.core_type<tc>, window_params = [{pipeline_mode = #tpu.pipeline_mode<synchronous>, transform_indices = @transform_0, window_bounds = array<i64: 2, 2313>}, {pipeline_mode = #tpu.pipeline_mode<synchronous>, transform_indices = @transform_1, window_bounds = array<i64: 2, 2313>}, {pipeline_mode = #tpu.pipeline_mode<synchronous>, transform_indices = @transform_2, window_bounds = array<i64: 2, 2313>}, {pipeline_mode = #tpu.pipeline_mode<synchronous>, transform_indices = @transform_3, window_bounds = array<i64: 2, 2313>}, {pipeline_mode = #tpu.pipeline_mode<synchronous>, transform_indices = @transform_4, window_bounds = array<i64: 1, 2313>}, {pipeline_mode = #tpu.pipeline_mode<synchronous>, transform_indices = @transform_5, window_bounds = array<i64: 2, 2313>}, {pipeline_mode = #tpu.pipeline_mode<synchronous>, transform_indices = @transform_6, window_bounds = array<i64: 2, 2313>}, {pipeline_mode = #tpu.pipeline_mode<synchronous>, transform_indices = @transform_7, window_bounds = array<i64: 2, 2313>}, {pipeline_mode = #tpu.pipeline_mode<synchronous>, transform_indices = @transform_8, window_bounds = array<i64: 2, 2313>}]} {
    %c0 = arith.constant 0 : index
    %c0_0 = arith.constant 0 : index
    %0 = vector.load %arg1[%c0, %c0_0] : memref<2x2313xf32, #tpu.memory_space<vmem>>, vector<2x2313xf32>
    %c0_1 = arith.constant 0 : index
    %c0_2 = arith.constant 0 : index
    %1 = vector.load %arg2[%c0_1, %c0_2] : memref<2x2313xf32, #tpu.memory_space<vmem>>, vector<2x2313xf32>
    %c0_3 = arith.constant 0 : index
    %c0_4 = arith.constant 0 : index
    %2 = vector.load %arg3[%c0_3, %c0_4] : memref<2x2313xf32, #tpu.memory_space<vmem>>, vector<2x2313xf32>
    %c0_5 = arith.constant 0 : index
    %c0_6 = arith.constant 0 : index
    %3 = vector.load %arg4[%c0_5, %c0_6] : memref<2x2313xf32, #tpu.memory_space<vmem>>, vector<2x2313xf32>
    %c0_7 = arith.constant 0 : index
    %c0_8 = arith.constant 0 : index
    %4 = vector.load %arg5[%c0_7, %c0_8] : memref<1x2313xf32, #tpu.memory_space<vmem>>, vector<1x2313xf32>
    %5 = arith.mulf %0, %2 : vector<2x2313xf32>
    %6 = arith.mulf %1, %3 : vector<2x2313xf32>
    %7 = arith.addf %5, %6 : vector<2x2313xf32>
    %8 = arith.mulf %1, %2 : vector<2x2313xf32>
    %9 = arith.mulf %0, %3 : vector<2x2313xf32>
    %10 = arith.subf %8, %9 : vector<2x2313xf32>
    %11 = arith.mulf %0, %0 : vector<2x2313xf32>
    %12 = arith.mulf %1, %1 : vector<2x2313xf32>
    %13 = arith.addf %11, %12 : vector<2x2313xf32>
    %14 = arith.mulf %2, %2 : vector<2x2313xf32>
    %15 = arith.mulf %3, %3 : vector<2x2313xf32>
    %16 = arith.addf %14, %15 : vector<2x2313xf32>
    %17 = arith.mulf %13, %16 : vector<2x2313xf32>
    %18 = math.sqrt %17 : vector<2x2313xf32>
    %cst = arith.constant 1.000000e-10 : f32
    %19 = vector.broadcast %cst : f32 to vector<2x2313xf32>
    %20 = arith.addf %18, %19 : vector<2x2313xf32>
    %21 = arith.divf %7, %20 : vector<2x2313xf32>
    %22 = arith.divf %10, %20 : vector<2x2313xf32>
    %23 = arith.mulf %21, %21 : vector<2x2313xf32>
    %24 = arith.mulf %22, %22 : vector<2x2313xf32>
    %25 = arith.addf %23, %24 : vector<2x2313xf32>
    %26 = arith.mulf %4, %4 : vector<1x2313xf32>
    %27 = vector.broadcast %26 : vector<1x2313xf32> to vector<2x2313xf32>
    %28 = arith.mulf %27, %21 : vector<2x2313xf32>
    %29 = arith.mulf %28, %21 : vector<2x2313xf32>
    %30 = vector.broadcast %26 : vector<1x2313xf32> to vector<2x2313xf32>
    %31 = arith.mulf %30, %25 : vector<2x2313xf32>
    %32 = arith.subf %29, %31 : vector<2x2313xf32>
    %33 = vector.broadcast %26 : vector<1x2313xf32> to vector<2x2313xf32>
    %34 = arith.addf %32, %33 : vector<2x2313xf32>
    %cst_9 = arith.constant 2.000000e+00 : f32
    %35 = vector.broadcast %cst_9 : f32 to vector<1x2313xf32>
    %36 = arith.mulf %35, %4 : vector<1x2313xf32>
    %37 = vector.broadcast %36 : vector<1x2313xf32> to vector<2x2313xf32>
    %38 = arith.mulf %37, %21 : vector<2x2313xf32>
    %39 = arith.subf %34, %38 : vector<2x2313xf32>
    %40 = arith.addf %39, %25 : vector<2x2313xf32>
    %cst_10 = arith.constant 0.000000e+00 : f32
    %41 = vector.broadcast %cst_10 : f32 to vector<2x2313xf32>
    %42 = arith.maximumf %40, %41 : vector<2x2313xf32>
    %43 = math.sqrt %42 : vector<2x2313xf32>
    %44 = vector.broadcast %4 : vector<1x2313xf32> to vector<2x2313xf32>
    %45 = arith.mulf %44, %21 : vector<2x2313xf32>
    %46 = arith.subf %45, %25 : vector<2x2313xf32>
    %47 = arith.subf %46, %43 : vector<2x2313xf32>
    %cst_11 = arith.constant 1.000000e+00 : f32
    %48 = vector.broadcast %cst_11 : f32 to vector<2x2313xf32>
    %49 = arith.subf %25, %48 : vector<2x2313xf32>
    %cst_12 = arith.constant 1.000000e-10 : f32
    %50 = vector.broadcast %cst_12 : f32 to vector<2x2313xf32>
    %51 = arith.addf %49, %50 : vector<2x2313xf32>
    %52 = arith.divf %47, %51 : vector<2x2313xf32>
    %cst_13 = arith.constant 1.000000e+00 : f32
    %53 = vector.broadcast %cst_13 : f32 to vector<2x2313xf32>
    %54 = arith.addf %52, %53 : vector<2x2313xf32>
    %cst_14 = arith.constant 1.000000e+00 : f32
    %55 = vector.broadcast %cst_14 : f32 to vector<2x2313xf32>
    %56 = arith.divf %55, %54 : vector<2x2313xf32>
    %cst_15 = arith.constant 2.000000e-01 : f32
    %57 = vector.broadcast %cst_15 : f32 to vector<2x2313xf32>
    %58 = arith.cmpf olt, %56, %57 : vector<2x2313xf32>
    %59 = arith.extui %58 : vector<2x2313xi1> to vector<2x2313xi32>
    %60 = arith.sitofp %59 : vector<2x2313xi32> to vector<2x2313xf32>
    %61 = arith.mulf %0, %60 : vector<2x2313xf32>
    %c0_16 = arith.constant 0 : index
    %c0_17 = arith.constant 0 : index
    %62 = vector.load %arg6[%c0_16, %c0_17] : memref<2x2313xf32, #tpu.memory_space<vmem>>, vector<2x2313xf32>
    tpu.vector_store %arg6[%c0_16, %c0_17], %61 {strides = array<i32>} : memref<2x2313xf32, #tpu.memory_space<vmem>>, vector<2x2313xf32>,
    %63 = arith.mulf %1, %60 : vector<2x2313xf32>
    %c0_18 = arith.constant 0 : index
    %c0_19 = arith.constant 0 : index
    %64 = vector.load %arg7[%c0_18, %c0_19] : memref<2x2313xf32, #tpu.memory_space<vmem>>, vector<2x2313xf32>
    tpu.vector_store %arg7[%c0_18, %c0_19], %63 {strides = array<i32>} : memref<2x2313xf32, #tpu.memory_space<vmem>>, vector<2x2313xf32>,
    %65 = arith.mulf %2, %60 : vector<2x2313xf32>
    %c0_20 = arith.constant 0 : index
    %c0_21 = arith.constant 0 : index
    %66 = vector.load %arg8[%c0_20, %c0_21] : memref<2x2313xf32, #tpu.memory_space<vmem>>, vector<2x2313xf32>
    tpu.vector_store %arg8[%c0_20, %c0_21], %65 {strides = array<i32>} : memref<2x2313xf32, #tpu.memory_space<vmem>>, vector<2x2313xf32>,
    %67 = arith.mulf %3, %60 : vector<2x2313xf32>
    %c0_22 = arith.constant 0 : index
    %c0_23 = arith.constant 0 : index
    %68 = vector.load %arg9[%c0_22, %c0_23] : memref<2x2313xf32, #tpu.memory_space<vmem>>, vector<2x2313xf32>
    tpu.vector_store %arg9[%c0_22, %c0_23], %67 {strides = array<i32>} : memref<2x2313xf32, #tpu.memory_space<vmem>>, vector<2x2313xf32>,
    return
  }
  func.func @transform_0(%arg0: i32) -> (i32, i32) {
    %c0_i32 = arith.constant 0 : i32
    %c0_i32_0 = arith.constant 0 : i32
    %c0_i32_1 = arith.constant 0 : i32
    return %c0_i32, %c0_i32_0 : i32, i32
  }
  func.func @transform_1(%arg0: i32) -> (i32, i32) {
    %c0_i32 = arith.constant 0 : i32
    %c0_i32_0 = arith.constant 0 : i32
    %c0_i32_1 = arith.constant 0 : i32
    return %c0_i32, %c0_i32_0 : i32, i32
  }
  func.func @transform_2(%arg0: i32) -> (i32, i32) {
    %c0_i32 = arith.constant 0 : i32
    %c0_i32_0 = arith.constant 0 : i32
    %c0_i32_1 = arith.constant 0 : i32
    return %c0_i32, %c0_i32_0 : i32, i32
  }
  func.func @transform_3(%arg0: i32) -> (i32, i32) {
    %c0_i32 = arith.constant 0 : i32
    %c0_i32_0 = arith.constant 0 : i32
    %c0_i32_1 = arith.constant 0 : i32
    return %c0_i32, %c0_i32_0 : i32, i32
  }
  func.func @transform_4(%arg0: i32) -> (i32, i32) {
    %c0_i32 = arith.constant 0 : i32
    %c0_i32_0 = arith.constant 0 : i32
    %c0_i32_1 = arith.constant 0 : i32
    return %c0_i32, %c0_i32_0 : i32, i32
  }
  func.func @transform_5(%arg0: i32) -> (i32, i32) {
    %c0_i32 = arith.constant 0 : i32
    %c0_i32_0 = arith.constant 0 : i32
    %c0_i32_1 = arith.constant 0 : i32
    return %c0_i32, %c0_i32_0 : i32, i32
  }
  func.func @transform_6(%arg0: i32) -> (i32, i32) {
    %c0_i32 = arith.constant 0 : i32
    %c0_i32_0 = arith.constant 0 : i32
    %c0_i32_1 = arith.constant 0 : i32
    return %c0_i32, %c0_i32_0 : i32, i32
  }
  func.func @transform_7(%arg0: i32) -> (i32, i32) {
    %c0_i32 = arith.constant 0 : i32
    %c0_i32_0 = arith.constant 0 : i32
    %c0_i32_1 = arith.constant 0 : i32
    return %c0_i32, %c0_i32_0 : i32, i32
  }
  func.func @transform_8(%arg0: i32) -> (i32, i32) {
    %c0_i32 = arith.constant 0 : i32
    %c0_i32_0 = arith.constant 0 : i32
    %c0_i32_1 = arith.constant 0 : i32
    return %c0_i32, %c0_i32_0 : i32, i32
  }
}

</mosaic_0001>

<llo_original>
// kernel: tpu_custom_call.1
$region0: #{tpu_custom_call.1}
  #allocation0 [shape = 'u32[]', space=smem, size = 0x4, offset = 0x4, fixed_abs, tag = 'smem constant byte address 0x4 - core index']
  #allocation1 [shape = 'u32[144,128]{1,0:T(1,128)}', space=vmem, size = 0x12000, scoped, tag = 'internal scratch']
  %s0 = inlined_call_operand.hbm [shape: f32[2,2313], index: 0, kind: input, shape index: {}]
  %s1 = inlined_call_operand.hbm [shape: f32[2,2313], index: 1, kind: input, shape index: {}]
  %s2 = inlined_call_operand.hbm [shape: f32[2,2313], index: 2, kind: input, shape index: {}]
  %s3 = inlined_call_operand.hbm [shape: f32[2,2313], index: 3, kind: input, shape index: {}]
  %s4 = inlined_call_operand.hbm [shape: f32[1,2313], index: 4, kind: input, shape index: {}]
  %s5 = inlined_call_operand.hbm [shape: f32[2,2313], index: 5, kind: output, shape index: {0}]
  %s6 = inlined_call_operand.hbm [shape: f32[2,2313], index: 6, kind: output, shape index: {1}]
  %s7 = inlined_call_operand.hbm [shape: f32[2,2313], index: 7, kind: output, shape index: {2}]
  %s8 = inlined_call_operand.hbm [shape: f32[2,2313], index: 8, kind: output, shape index: {3}]
  %9 = xla_tuple %s5, %s6, %s7, %s8
  %s10 = sld [smem:[#allocation0]]
  $region74: #{tpu_custom_call.1} parent=0
    _
  %s12 = ssub.s32 1, %s10
  %s13 = scalar_select 0, %s12, %s10
  $region1: #{tpu_custom_call.1} parent=0
    #allocation2 [shape = 'u8[19456]{0}', space=vmem, size = 0x4c00, scoped, tag = 'input window, operand 0, single buffered']
    #allocation3 [shape = 's32[1]{0}', space=sflag, size = 0x4, scoped, tag = 'scoped memory for tpu_custom_call.1']
    #allocation4 [shape = 's32[1]{0}', space=sflag, size = 0x4, scoped, tag = 'scoped memory for tpu_custom_call.1']
    #allocation5 [shape = 'u8[19456]{0}', space=vmem, size = 0x4c00, scoped, tag = 'input window, operand 1, single buffered']
    #allocation6 [shape = 's32[1]{0}', space=sflag, size = 0x4, scoped, tag = 'scoped memory for tpu_custom_call.1']
    #allocation7 [shape = 'u8[19456]{0}', space=vmem, size = 0x4c00, scoped, tag = 'input window, operand 2, single buffered']
    #allocation8 [shape = 'u8[19456]{0}', space=vmem, size = 0x4c00, scoped, tag = 'input window, operand 3, single buffered']
    #allocation9 [shape = 's32[1]{0}', space=sflag, size = 0x4, scoped, tag = 'scoped memory for tpu_custom_call.1']
    #allocation10 [shape = 'u8[9728]{0}', space=vmem, size = 0x2800, scoped, tag = 'input window, operand 4, single buffered']
    #allocation11 [shape = 'u8[19456]{0}', space=vmem, size = 0x4c00, scoped, tag = 'output window, operand 0, single buffered']
    #allocation12 [shape = 'u8[19456]{0}', space=vmem, size = 0x4c00, scoped, tag = 'output window, operand 1, single buffered']
    #allocation13 [shape = 's32[1]{0}', space=sflag, size = 0x4, scoped, tag = 'scoped memory for tpu_custom_call.1']
    #allocation14 [shape = 'u8[19456]{0}', space=vmem, size = 0x4c00, scoped, tag = 'output window, operand 2, single buffered']
    #allocation15 [shape = 'u8[19456]{0}', space=vmem, size = 0x4c00, scoped, tag = 'output window, operand 3, single buffered']
    #allocation16 [shape = 's32[1]{0}', space=sflag, size = 0x4, scoped, tag = 'scoped memory for tpu_custom_call.1']
    %14 = vsyncpa [#allocation3], 0
    %15 = vsyncpa [#allocation6], 0
    %16 = vsyncpa [#allocation9], 0
    %17 = vsyncpa [#allocation4], 0
    %18 = vsyncpa [#allocation13], 0
    %19 = vsyncpa [#allocation16], 0
    // Predicated region
    $region2: #{tpu_custom_call.1} parent=1 // pred_check
      _
    $region3: #{tpu_custom_call.1} parent=1 // pred_check_branch
      %21 = sbr.rel (0) target = $region5
    $region4: #{tpu_custom_call.1} parent=1 // pred_region
      %s23 = ssub.s32 608, 608
      %24 = vsyncadd [#allocation3], %s23
      %s26 = sshll.u32 [#allocation2], 4
      %s27 = int_to_ptr.vmem [resolvable:$true] %s26
      %29 = dma.hbm_to_vmem [thread:$0]  %s0, 608, %s27, [#allocation3]
    $region5: #{tpu_custom_call.1} parent=1 // pred_fallthru
      _
    // Predicated region
    $region6: #{tpu_custom_call.1} parent=1 // pred_check
      _
    $region7: #{tpu_custom_call.1} parent=1 // pred_check_branch
      %31 = sbr.rel (0) target = $region9
    $region8: #{tpu_custom_call.1} parent=1 // pred_region
      %s33 = ssub.s32 608, 608
      %34 = vsyncadd [#allocation6], %s33
      %s36 = sshll.u32 [#allocation5], 4
      %s37 = int_to_ptr.vmem [resolvable:$true] %s36
      %39 = dma.hbm_to_vmem [thread:$0]  %s1, 608, %s37, [#allocation6]
    $region9: #{tpu_custom_call.1} parent=1 // pred_fallthru
      _
    // Predicated region
    $region10: #{tpu_custom_call.1} parent=1 // pred_check
      _
    $region11: #{tpu_custom_call.1} parent=1 // pred_check_branch
      %41 = sbr.rel (0) target = $region13
    $region12: #{tpu_custom_call.1} parent=1 // pred_region
      %s43 = ssub.s32 608, 608
      %44 = vsyncadd [#allocation6], %s43
      %s46 = sshll.u32 [#allocation7], 4
      %s47 = int_to_ptr.vmem [resolvable:$true] %s46
      %49 = dma.hbm_to_vmem [thread:$0]  %s2, 608, %s47, [#allocation6]
    $region13: #{tpu_custom_call.1} parent=1 // pred_fallthru
      _
    // Predicated region
    $region14: #{tpu_custom_call.1} parent=1 // pred_check
      _
    $region15: #{tpu_custom_call.1} parent=1 // pred_check_branch
      %51 = sbr.rel (0) target = $region17
    $region16: #{tpu_custom_call.1} parent=1 // pred_region
      %s53 = ssub.s32 608, 608
      %54 = vsyncadd [#allocation9], %s53
      %s56 = sshll.u32 [#allocation8], 4
      %s57 = int_to_ptr.vmem [resolvable:$true] %s56
      %59 = dma.hbm_to_vmem [thread:$0]  %s3, 608, %s57, [#allocation9]
    $region17: #{tpu_custom_call.1} parent=1 // pred_fallthru
      _
    // Predicated region
    $region18: #{tpu_custom_call.1} parent=1 // pred_check
      _
    $region19: #{tpu_custom_call.1} parent=1 // pred_check_branch
      %61 = sbr.rel (0) target = $region21
    $region20: #{tpu_custom_call.1} parent=1 // pred_region
      %s63 = ssub.s32 304, 304
      %64 = vsyncadd [#allocation9], %s63
      %s66 = sshll.u32 [#allocation10], 4
      %s67 = int_to_ptr.vmem [resolvable:$true] %s66
      %69 = dma.hbm_to_vmem [thread:$0]  %s4, 304, %s67, [#allocation9]
    $region21: #{tpu_custom_call.1} parent=1 // pred_fallthru
      _
    // Predicated region
    $region22: #{tpu_custom_call.1} parent=1 // pred_check
      _
    $region23: #{tpu_custom_call.1} parent=1 // pred_check_branch
      %71 = sbr.rel (0) target = $region25
    $region24: #{tpu_custom_call.1} parent=1 // pred_region
      %72 = dma.done [#allocation3], 608
    $region25: #{tpu_custom_call.1} parent=1 // pred_fallthru
      _
    // Predicated region
    $region26: #{tpu_custom_call.1} parent=1 // pred_check
      _
    $region27: #{tpu_custom_call.1} parent=1 // pred_check_branch
      %74 = sbr.rel (0) target = $region29
    $region28: #{tpu_custom_call.1} parent=1 // pred_region
      %75 = dma.done [#allocation6], 608
    $region29: #{tpu_custom_call.1} parent=1 // pred_fallthru
      _
    // Predicated region
    $region30: #{tpu_custom_call.1} parent=1 // pred_check
      _
    $region31: #{tpu_custom_call.1} parent=1 // pred_check_branch
      %77 = sbr.rel (0) target = $region33
    $region32: #{tpu_custom_call.1} parent=1 // pred_region
      %78 = dma.done [#allocation6], 608
    $region33: #{tpu_custom_call.1} parent=1 // pred_fallthru
      _
    // Predicated region
    $region34: #{tpu_custom_call.1} parent=1 // pred_check
      _
    $region35: #{tpu_custom_call.1} parent=1 // pred_check_branch
      %80 = sbr.rel (0) target = $region37
    $region36: #{tpu_custom_call.1} parent=1 // pred_region
      %81 = dma.done [#allocation9], 608
    $region37: #{tpu_custom_call.1} parent=1 // pred_fallthru
      _
    // Predicated region
    $region38: #{tpu_custom_call.1} parent=1 // pred_check
      _
    $region39: #{tpu_custom_call.1} parent=1 // pred_check_branch
      %83 = sbr.rel (0) target = $region41
    $region40: #{tpu_custom_call.1} parent=1 // pred_region
      %84 = dma.done [#allocation9], 304
    $region41: #{tpu_custom_call.1} parent=1 // pred_fallthru
      _
    %v85 = vld [vmem:[#allocation2] sm:$0xff]
    %v86 = vld [vmem:[#allocation2 + $0x8] sm:$0xff]
    %v87 = vld [vmem:[#allocation2 + $0x10] sm:$0xff]
    %v88 = vld [vmem:[#allocation2 + $0x18] sm:$0xff]
    %v89 = vld [vmem:[#allocation2 + $0x20] sm:$0x3f]
    %v90 = vld [vmem:[#allocation5] sm:$0xff]
    %v91 = vld [vmem:[#allocation5 + $0x8] sm:$0xff]
    %v92 = vld [vmem:[#allocation5 + $0x10] sm:$0xff]
    %v93 = vld [vmem:[#allocation5 + $0x18] sm:$0xff]
    %v94 = vld [vmem:[#allocation5 + $0x20] sm:$0x3f]
    %v95 = vld [vmem:[#allocation7] sm:$0xff]
    %v96 = vld [vmem:[#allocation7 + $0x8] sm:$0xff]
    %v97 = vld [vmem:[#allocation7 + $0x10] sm:$0xff]
    %v98 = vld [vmem:[#allocation7 + $0x18] sm:$0xff]
    %v99 = vld [vmem:[#allocation7 + $0x20] sm:$0x3f]
    %v100 = vld [vmem:[#allocation8] sm:$0xff]
    %v101 = vld [vmem:[#allocation8 + $0x8] sm:$0xff]
    %v102 = vld [vmem:[#allocation8 + $0x10] sm:$0xff]
    %v103 = vld [vmem:[#allocation8 + $0x18] sm:$0xff]
    %v104 = vld [vmem:[#allocation8 + $0x20] sm:$0x3f]
    %v105 = vld [vmem:[#allocation10] sm:$0xff]
    %v106 = vld [vmem:[#allocation10 + $0x8] sm:$0xff]
    %v107 = vld [vmem:[#allocation10 + $0x10] sm:$0x7]
    %v108 = vmul.f32 %v85, %v95
    %v109 = vmul.f32 %v86, %v96
    %v110 = vmul.f32 %v87, %v97
    %v111 = vmul.f32 %v88, %v98
    %v112 = vmul.f32 %v89, %v99
    %v113 = vmul.f32 %v90, %v100
    %v114 = vmul.f32 %v91, %v101
    %v115 = vmul.f32 %v92, %v102
    %v116 = vmul.f32 %v93, %v103
    %v117 = vmul.f32 %v94, %v104
    %v118 = vadd.f32 %v108, %v113
    %v119 = vadd.f32 %v109, %v114
    %v120 = vadd.f32 %v110, %v115
    %v121 = vadd.f32 %v111, %v116
    %v122 = vadd.f32 %v112, %v117
    %v123 = vmul.f32 %v90, %v95
    %v124 = vmul.f32 %v91, %v96
    %v125 = vmul.f32 %v92, %v97
    %v126 = vmul.f32 %v93, %v98
    %v127 = vmul.f32 %v94, %v99
    %v128 = vmul.f32 %v85, %v100
    %v129 = vmul.f32 %v86, %v101
    %v130 = vmul.f32 %v87, %v102
    %v131 = vmul.f32 %v88, %v103
    %v132 = vmul.f32 %v89, %v104
    %v133 = vsub.f32 %v123, %v128
    %v134 = vsub.f32 %v124, %v129
    %v135 = vsub.f32 %v125, %v130
    %v136 = vsub.f32 %v126, %v131
    %v137 = vsub.f32 %v127, %v132
    %v138 = vmul.f32 %v85, %v85
    %v139 = vmul.f32 %v86, %v86
    %v140 = vmul.f32 %v87, %v87
    %v141 = vmul.f32 %v88, %v88
    %v142 = vmul.f32 %v89, %v89
    %v143 = vmul.f32 %v90, %v90
    %v144 = vmul.f32 %v91, %v91
    %v145 = vmul.f32 %v92, %v92
    %v146 = vmul.f32 %v93, %v93
    %v147 = vmul.f32 %v94, %v94
    %v148 = vadd.f32 %v138, %v143
    %v149 = vadd.f32 %v139, %v144
    %v150 = vadd.f32 %v140, %v145
    %v151 = vadd.f32 %v141, %v146
    %v152 = vadd.f32 %v142, %v147
    %v153 = vmul.f32 %v95, %v95
    %v154 = vmul.f32 %v96, %v96
    %v155 = vmul.f32 %v97, %v97
    %v156 = vmul.f32 %v98, %v98
    %v157 = vmul.f32 %v99, %v99
    %v158 = vmul.f32 %v100, %v100
    %v159 = vmul.f32 %v101, %v101
    %v160 = vmul.f32 %v102, %v102
    %v161 = vmul.f32 %v103, %v103
    %v162 = vmul.f32 %v104, %v104
    %v163 = vadd.f32 %v153, %v158
    %v164 = vadd.f32 %v154, %v159
    %v165 = vadd.f32 %v155, %v160
    %v166 = vadd.f32 %v156, %v161
    %v167 = vadd.f32 %v157, %v162
    %v168 = vmul.f32 %v148, %v163
    %v169 = vmul.f32 %v149, %v164
    %v170 = vmul.f32 %v150, %v165
    %v171 = vmul.f32 %v151, %v166
    %v172 = vmul.f32 %v152, %v167
    %v173 = vrsqrt.pop %v168
    %v174 = vmul.f32 %v168, %v173
    %vm175 = vcmp.eq.f32.partialorder %v168, inf
    %v176 = vsel %vm175, %v168, %v174
    %vm177 = vcmp.eq.f32.partialorder %v168, 0.0
    %v178 = vand.u32 %v168, 2147483648
    %v179 = vsel %vm177, %v178, %v176
    %v180 = vrsqrt.pop %v169
    %v181 = vmul.f32 %v169, %v180
    %vm182 = vcmp.eq.f32.partialorder %v169, inf
    %v183 = vsel %vm182, %v169, %v181
    %vm184 = vcmp.eq.f32.partialorder %v169, 0.0
    %v185 = vand.u32 %v169, 2147483648
    %v186 = vsel %vm184, %v185, %v183
    %v187 = vrsqrt.pop %v170
    %v188 = vmul.f32 %v170, %v187
    %vm189 = vcmp.eq.f32.partialorder %v170, inf
    %v190 = vsel %vm189, %v170, %v188
    %vm191 = vcmp.eq.f32.partialorder %v170, 0.0
    %v192 = vand.u32 %v170, 2147483648
    %v193 = vsel %vm191, %v192, %v190
    %v194 = vrsqrt.pop %v171
    %v195 = vmul.f32 %v171, %v194
    %vm196 = vcmp.eq.f32.partialorder %v171, inf
    %v197 = vsel %vm196, %v171, %v195
    %vm198 = vcmp.eq.f32.partialorder %v171, 0.0
    %v199 = vand.u32 %v171, 2147483648
    %v200 = vsel %vm198, %v199, %v197
    %v201 = vrsqrt.pop %v172
    %v202 = vmul.f32 %v172, %v201
    %vm203 = vcmp.eq.f32.partialorder %v172, inf
    %v204 = vsel %vm203, %v172, %v202
    %vm205 = vcmp.eq.f32.partialorder %v172, 0.0
    %v206 = vand.u32 %v172, 2147483648
    %v207 = vsel %vm205, %v206, %v204
    %v208 = vadd.f32 %v179, 1e-10
    %v209 = vadd.f32 %v186, 1e-10
    %v210 = vadd.f32 %v193, 1e-10
    %v211 = vadd.f32 %v200, 1e-10
    %v212 = vadd.f32 %v207, 1e-10
    %v213 = vrcp.pop %v208
    %v214 = vmul.f32 %v118, %v213
    %v215 = vrcp.pop %v209
    %v216 = vmul.f32 %v119, %v215
    %v217 = vrcp.pop %v210
    %v218 = vmul.f32 %v120, %v217
    %v219 = vrcp.pop %v211
    %v220 = vmul.f32 %v121, %v219
    %v221 = vrcp.pop %v212
    %v222 = vmul.f32 %v122, %v221
    %v223 = vmul.f32 %v133, %v213
    %v224 = vmul.f32 %v134, %v215
    %v225 = vmul.f32 %v135, %v217
    %v226 = vmul.f32 %v136, %v219
    %v227 = vmul.f32 %v137, %v221
    %v228 = vmul.f32 %v214, %v214
    %v229 = vmul.f32 %v216, %v216
    %v230 = vmul.f32 %v218, %v218
    %v231 = vmul.f32 %v220, %v220
    %v232 = vmul.f32 %v222, %v222
    %v233 = vmul.f32 %v223, %v223
    %v234 = vmul.f32 %v224, %v224
    %v235 = vmul.f32 %v225, %v225
    %v236 = vmul.f32 %v226, %v226
    %v237 = vmul.f32 %v227, %v227
    %v238 = vadd.f32 %v228, %v233
    %v239 = vadd.f32 %v229, %v234
    %v240 = vadd.f32 %v230, %v235
    %v241 = vadd.f32 %v231, %v236
    %v242 = vadd.f32 %v232, %v237
    %v243 = vmul.f32 %v105, %v105
    %v244 = vmul.f32 %v106, %v106
    %v245 = vmul.f32 %v107, %v107
    %v249 = vlaneseq
    %v250 = vshrl.u32 %v249, 7
    %v251 = vsub.s32 0, %v250
    %v252 = vrot.slane %v243, %v251
    %v253 = vlaneseq
    %v254 = vshrl.u32 %v253, 7
    %v255 = vsub.s32 1, %v254
    %v256 = vrot.slane %v243, %v255
    %v257 = vlaneseq
    %v258 = vshrl.u32 %v257, 7
    %v259 = vsub.s32 2, %v258
    %v260 = vrot.slane %v243, %v259
    %v261 = vlaneseq
    %v262 = vshrl.u32 %v261, 7
    %v263 = vsub.s32 3, %v262
    %v264 = vrot.slane %v243, %v263
    %v265 = vlaneseq
    %v266 = vshrl.u32 %v265, 7
    %v267 = vsub.s32 4, %v266
    %v268 = vrot.slane %v243, %v267
    %v269 = vlaneseq
    %v270 = vshrl.u32 %v269, 7
    %v271 = vsub.s32 5, %v270
    %v272 = vrot.slane %v243, %v271
    %v273 = vlaneseq
    %v274 = vshrl.u32 %v273, 7
    %v275 = vsub.s32 6, %v274
    %v276 = vrot.slane %v243, %v275
    %v277 = vlaneseq
    %v278 = vshrl.u32 %v277, 7
    %v279 = vsub.s32 7, %v278
    %v280 = vrot.slane %v243, %v279
    %v281 = vlaneseq
    %v282 = vshrl.u32 %v281, 7
    %v283 = vsub.s32 0, %v282
    %v284 = vrot.slane %v244, %v283
    %v285 = vlaneseq
    %v286 = vshrl.u32 %v285, 7
    %v287 = vsub.s32 1, %v286
    %v288 = vrot.slane %v244, %v287
    %v289 = vlaneseq
    %v290 = vshrl.u32 %v289, 7
    %v291 = vsub.s32 2, %v290
    %v292 = vrot.slane %v244, %v291
    %v293 = vlaneseq
    %v294 = vshrl.u32 %v293, 7
    %v295 = vsub.s32 3, %v294
    %v296 = vrot.slane %v244, %v295
    %v297 = vlaneseq
    %v298 = vshrl.u32 %v297, 7
    %v299 = vsub.s32 4, %v298
    %v300 = vrot.slane %v244, %v299
    %v301 = vlaneseq
    %v302 = vshrl.u32 %v301, 7
    %v303 = vsub.s32 5, %v302
    %v304 = vrot.slane %v244, %v303
    %v305 = vlaneseq
    %v306 = vshrl.u32 %v305, 7
    %v307 = vsub.s32 6, %v306
    %v308 = vrot.slane %v244, %v307
    %v309 = vlaneseq
    %v310 = vshrl.u32 %v309, 7
    %v311 = vsub.s32 7, %v310
    %v312 = vrot.slane %v244, %v311
    %v313 = vlaneseq
    %v314 = vshrl.u32 %v313, 7
    %v315 = vsub.s32 0, %v314
    %v316 = vrot.slane %v245, %v315
    %v317 = vlaneseq
    %v318 = vshrl.u32 %v317, 7
    %v319 = vsub.s32 1, %v318
    %v320 = vrot.slane %v245, %v319
    %v321 = vlaneseq
    %v322 = vshrl.u32 %v321, 7
    %v323 = vsub.s32 2, %v322
    %v324 = vrot.slane %v245, %v323
    %v349 = vcombine.high %v214, %v214
    %v351 = vunpack.c.l.s4 1983009808
    %v352 = vunpack.c.0.s8 %v351
    %v353 = vlaneseq
    %v354 = vshrl.u32 %v353, 7
    %v355 = vsub.s32 %v352, %v354
    %v356 = vrot.slane %v214, %v355
    %v358 = vunpack.c.l.s4 1983009808
    %v359 = vunpack.c.0.s8 %v358
    %v360 = vlaneseq
    %v361 = vshrl.u32 %v360, 7
    %v362 = vsub.s32 %v359, %v361
    %v363 = vrot.slane %v349, %v362
    %v364 = vcombine.high %v356, %v356
    %v365 = vcombine.high %v363, %v363
    %v366 = vcombine.high %v216, %v216
    %v368 = vunpack.c.l.s4 1983009808
    %v369 = vunpack.c.0.s8 %v368
    %v370 = vlaneseq
    %v371 = vshrl.u32 %v370, 7
    %v372 = vsub.s32 %v369, %v371
    %v373 = vrot.slane %v216, %v372
    %v375 = vunpack.c.l.s4 1983009808
    %v376 = vunpack.c.0.s8 %v375
    %v377 = vlaneseq
    %v378 = vshrl.u32 %v377, 7
    %v379 = vsub.s32 %v376, %v378
    %v380 = vrot.slane %v366, %v379
    %v381 = vcombine.high %v373, %v373
    %v382 = vcombine.high %v380, %v380
    %v383 = vcombine.high %v218, %v218
    %v385 = vunpack.c.l.s4 1983009808
    %v386 = vunpack.c.0.s8 %v385
    %v387 = vlaneseq
    %v388 = vshrl.u32 %v387, 7
    %v389 = vsub.s32 %v386, %v388
    %v390 = vrot.slane %v218, %v389
    %v392 = vunpack.c.l.s4 1983009808
    %v393 = vunpack.c.0.s8 %v392
    %v394 = vlaneseq
    %v395 = vshrl.u32 %v394, 7
    %v396 = vsub.s32 %v393, %v395
    %v397 = vrot.slane %v383, %v396
    %v398 = vcombine.high %v390, %v390
    %v399 = vcombine.high %v397, %v397
    %v400 = vcombine.high %v220, %v220
    %v402 = vunpack.c.l.s4 1983009808
    %v403 = vunpack.c.0.s8 %v402
    %v404 = vlaneseq
    %v405 = vshrl.u32 %v404, 7
    %v406 = vsub.s32 %v403, %v405
    %v407 = vrot.slane %v220, %v406
    %v409 = vunpack.c.l.s4 1983009808
    %v410 = vunpack.c.0.s8 %v409
    %v411 = vlaneseq
    %v412 = vshrl.u32 %v411, 7
    %v413 = vsub.s32 %v410, %v412
    %v414 = vrot.slane %v400, %v413
    %v415 = vcombine.high %v407, %v407
    %v416 = vcombine.high %v414, %v414
    %v417 = vcombine.high %v222, %v222
    %v419 = vunpack.c.l.s4 1983009808
    %v420 = vunpack.c.0.s8 %v419
    %v421 = vlaneseq
    %v422 = vshrl.u32 %v421, 7
    %v423 = vsub.s32 %v420, %v422
    %v424 = vrot.slane %v222, %v423
    %v426 = vunpack.c.l.s4 1983009808
    %v427 = vunpack.c.0.s8 %v426
    %v428 = vlaneseq
    %v429 = vshrl.u32 %v428, 7
    %v430 = vsub.s32 %v427, %v429
    %v431 = vrot.slane %v417, %v430
    %v432 = vcombine.high %v424, %v424
    %v452 = vmul.f32 %v252, %v356
    %v453 = vmul.f32 %v256, %v364
    %v454 = vmul.f32 %v260, %v363
    %v455 = vmul.f32 %v264, %v365
    %v456 = vmul.f32 %v268, %v373
    %v457 = vmul.f32 %v272, %v381
    %v458 = vmul.f32 %v276, %v380
    %v459 = vmul.f32 %v280, %v382
    %v460 = vmul.f32 %v284, %v390
    %v461 = vmul.f32 %v288, %v398
    %v462 = vmul.f32 %v292, %v397
    %v463 = vmul.f32 %v296, %v399
    %v464 = vmul.f32 %v300, %v407
    %v465 = vmul.f32 %v304, %v415
    %v466 = vmul.f32 %v308, %v414
    %v467 = vmul.f32 %v312, %v416
    %v468 = vmul.f32 %v316, %v424
    %v469 = vmul.f32 %v320, %v432
    %v470 = vmul.f32 %v324, %v431
    %v471 = vmul.f32 %v452, %v356
    %v472 = vmul.f32 %v453, %v364
    %v473 = vmul.f32 %v454, %v363
    %v474 = vmul.f32 %v455, %v365
    %v475 = vmul.f32 %v456, %v373
    %v476 = vmul.f32 %v457, %v381
    %v477 = vmul.f32 %v458, %v380
    %v478 = vmul.f32 %v459, %v382
    %v479 = vmul.f32 %v460, %v390
    %v480 = vmul.f32 %v461, %v398
    %v481 = vmul.f32 %v462, %v397
    %v482 = vmul.f32 %v463, %v399
    %v483 = vmul.f32 %v464, %v407
    %v484 = vmul.f32 %v465, %v415
    %v485 = vmul.f32 %v466, %v414
    %v486 = vmul.f32 %v467, %v416
    %v487 = vmul.f32 %v468, %v424
    %v488 = vmul.f32 %v469, %v432
    %v489 = vmul.f32 %v470, %v431
    %v495 = vcombine.high %v238, %v238
    %v497 = vunpack.c.l.s4 1983009808
    %v498 = vunpack.c.0.s8 %v497
    %v499 = vlaneseq
    %v500 = vshrl.u32 %v499, 7
    %v501 = vsub.s32 %v498, %v500
    %v502 = vrot.slane %v238, %v501
    %v504 = vunpack.c.l.s4 1983009808
    %v505 = vunpack.c.0.s8 %v504
    %v506 = vlaneseq
    %v507 = vshrl.u32 %v506, 7
    %v508 = vsub.s32 %v505, %v507
    %v509 = vrot.slane %v495, %v508
    %v510 = vcombine.high %v502, %v502
    %v511 = vcombine.high %v509, %v509
    %v512 = vcombine.high %v239, %v239
    %v514 = vunpack.c.l.s4 1983009808
    %v515 = vunpack.c.0.s8 %v514
    %v516 = vlaneseq
    %v517 = vshrl.u32 %v516, 7
    %v518 = vsub.s32 %v515, %v517
    %v519 = vrot.slane %v239, %v518
    %v521 = vunpack.c.l.s4 1983009808
    %v522 = vunpack.c.0.s8 %v521
    %v523 = vlaneseq
    %v524 = vshrl.u32 %v523, 7
    %v525 = vsub.s32 %v522, %v524
    %v526 = vrot.slane %v512, %v525
    %v527 = vcombine.high %v519, %v519
    %v528 = vcombine.high %v526, %v526
    %v529 = vcombine.high %v240, %v240
    %v531 = vunpack.c.l.s4 1983009808
    %v532 = vunpack.c.0.s8 %v531
    %v533 = vlaneseq
    %v534 = vshrl.u32 %v533, 7
    %v535 = vsub.s32 %v532, %v534
    %v536 = vrot.slane %v240, %v535
    %v538 = vunpack.c.l.s4 1983009808
    %v539 = vunpack.c.0.s8 %v538
    %v540 = vlaneseq
    %v541 = vshrl.u32 %v540, 7
    %v542 = vsub.s32 %v539, %v541
    %v543 = vrot.slane %v529, %v542
    %v544 = vcombine.high %v536, %v536
    %v545 = vcombine.high %v543, %v543
    %v546 = vcombine.high %v241, %v241
    %v548 = vunpack.c.l.s4 1983009808
    %v549 = vunpack.c.0.s8 %v548
    %v550 = vlaneseq
    %v551 = vshrl.u32 %v550, 7
    %v552 = vsub.s32 %v549, %v551
    %v553 = vrot.slane %v241, %v552
    %v555 = vunpack.c.l.s4 1983009808
    %v556 = vunpack.c.0.s8 %v555
    %v557 = vlaneseq
    %v558 = vshrl.u32 %v557, 7
    %v559 = vsub.s32 %v556, %v558
    %v560 = vrot.slane %v546, %v559
    %v561 = vcombine.high %v553, %v553
    %v562 = vcombine.high %v560, %v560
    %v563 = vcombine.high %v242, %v242
    %v565 = vunpack.c.l.s4 1983009808
    %v566 = vunpack.c.0.s8 %v565
    %v567 = vlaneseq
    %v568 = vshrl.u32 %v567, 7
    %v569 = vsub.s32 %v566, %v568
    %v570 = vrot.slane %v242, %v569
    %v572 = vunpack.c.l.s4 1983009808
    %v573 = vunpack.c.0.s8 %v572
    %v574 = vlaneseq
    %v575 = vshrl.u32 %v574, 7
    %v576 = vsub.s32 %v573, %v575
    %v577 = vrot.slane %v563, %v576
    %v578 = vcombine.high %v570, %v570
    %v598 = vmul.f32 %v252, %v502
    %v599 = vmul.f32 %v256, %v510
    %v600 = vmul.f32 %v260, %v509
    %v601 = vmul.f32 %v264, %v511
    %v602 = vmul.f32 %v268, %v519
    %v603 = vmul.f32 %v272, %v527
    %v604 = vmul.f32 %v276, %v526
    %v605 = vmul.f32 %v280, %v528
    %v606 = vmul.f32 %v284, %v536
    %v607 = vmul.f32 %v288, %v544
    %v608 = vmul.f32 %v292, %v543
    %v609 = vmul.f32 %v296, %v545
    %v610 = vmul.f32 %v300, %v553
    %v611 = vmul.f32 %v304, %v561
    %v612 = vmul.f32 %v308, %v560
    %v613 = vmul.f32 %v312, %v562
    %v614 = vmul.f32 %v316, %v570
    %v615 = vmul.f32 %v320, %v578
    %v616 = vmul.f32 %v324, %v577
    %v617 = vsub.f32 %v471, %v598
    %v618 = vsub.f32 %v472, %v599
    %v619 = vsub.f32 %v473, %v600
    %v620 = vsub.f32 %v474, %v601
    %v621 = vsub.f32 %v475, %v602
    %v622 = vsub.f32 %v476, %v603
    %v623 = vsub.f32 %v477, %v604
    %v624 = vsub.f32 %v478, %v605
    %v625 = vsub.f32 %v479, %v606
    %v626 = vsub.f32 %v480, %v607
    %v627 = vsub.f32 %v481, %v608
    %v628 = vsub.f32 %v482, %v609
    %v629 = vsub.f32 %v483, %v610
    %v630 = vsub.f32 %v484, %v611
    %v631 = vsub.f32 %v485, %v612
    %v632 = vsub.f32 %v486, %v613
    %v633 = vsub.f32 %v487, %v614
    %v634 = vsub.f32 %v488, %v615
    %v635 = vsub.f32 %v489, %v616
    %v636 = vadd.f32 %v617, %v252
    %v637 = vadd.f32 %v618, %v256
    %v638 = vadd.f32 %v619, %v260
    %v639 = vadd.f32 %v620, %v264
    %v640 = vadd.f32 %v621, %v268
    %v641 = vadd.f32 %v622, %v272
    %v642 = vadd.f32 %v623, %v276
    %v643 = vadd.f32 %v624, %v280
    %v644 = vadd.f32 %v625, %v284
    %v645 = vadd.f32 %v626, %v288
    %v646 = vadd.f32 %v627, %v292
    %v647 = vadd.f32 %v628, %v296
    %v648 = vadd.f32 %v629, %v300
    %v649 = vadd.f32 %v630, %v304
    %v650 = vadd.f32 %v631, %v308
    %v651 = vadd.f32 %v632, %v312
    %v652 = vadd.f32 %v633, %v316
    %v653 = vadd.f32 %v634, %v320
    %v654 = vadd.f32 %v635, %v324
    %v655 = vmul.f32 %v105, 2.0
    %v656 = vmul.f32 %v106, 2.0
    %v657 = vmul.f32 %v107, 2.0
    %v661 = vlaneseq
    %v662 = vshrl.u32 %v661, 7
    %v663 = vsub.s32 0, %v662
    %v664 = vrot.slane %v655, %v663
    %v665 = vlaneseq
    %v666 = vshrl.u32 %v665, 7
    %v667 = vsub.s32 1, %v666
    %v668 = vrot.slane %v655, %v667
    %v669 = vlaneseq
    %v670 = vshrl.u32 %v669, 7
    %v671 = vsub.s32 2, %v670
    %v672 = vrot.slane %v655, %v671
    %v673 = vlaneseq
    %v674 = vshrl.u32 %v673, 7
    %v675 = vsub.s32 3, %v674
    %v676 = vrot.slane %v655, %v675
    %v677 = vlaneseq
    %v678 = vshrl.u32 %v677, 7
    %v679 = vsub.s32 4, %v678
    %v680 = vrot.slane %v655, %v679
    %v681 = vlaneseq
    %v682 = vshrl.u32 %v681, 7
    %v683 = vsub.s32 5, %v682
    %v684 = vrot.slane %v655, %v683
    %v685 = vlaneseq
    %v686 = vshrl.u32 %v685, 7
    %v687 = vsub.s32 6, %v686
    %v688 = vrot.slane %v655, %v687
    %v689 = vlaneseq
    %v690 = vshrl.u32 %v689, 7
    %v691 = vsub.s32 7, %v690
    %v692 = vrot.slane %v655, %v691
    %v693 = vlaneseq
    %v694 = vshrl.u32 %v693, 7
    %v695 = vsub.s32 0, %v694
    %v696 = vrot.slane %v656, %v695
    %v697 = vlaneseq
    %v698 = vshrl.u32 %v697, 7
    %v699 = vsub.s32 1, %v698
    %v700 = vrot.slane %v656, %v699
    %v701 = vlaneseq
    %v702 = vshrl.u32 %v701, 7
    %v703 = vsub.s32 2, %v702
    %v704 = vrot.slane %v656, %v703
    %v705 = vlaneseq
    %v706 = vshrl.u32 %v705, 7
    %v707 = vsub.s32 3, %v706
    %v708 = vrot.slane %v656, %v707
    %v709 = vlaneseq
    %v710 = vshrl.u32 %v709, 7
    %v711 = vsub.s32 4, %v710
    %v712 = vrot.slane %v656, %v711
    %v713 = vlaneseq
    %v714 = vshrl.u32 %v713, 7
    %v715 = vsub.s32 5, %v714
    %v716 = vrot.slane %v656, %v715
    %v717 = vlaneseq
    %v718 = vshrl.u32 %v717, 7
    %v719 = vsub.s32 6, %v718
    %v720 = vrot.slane %v656, %v719
    %v721 = vlaneseq
    %v722 = vshrl.u32 %v721, 7
    %v723 = vsub.s32 7, %v722
    %v724 = vrot.slane %v656, %v723
    %v725 = vlaneseq
    %v726 = vshrl.u32 %v725, 7
    %v727 = vsub.s32 0, %v726
    %v728 = vrot.slane %v657, %v727
    %v729 = vlaneseq
    %v730 = vshrl.u32 %v729, 7
    %v731 = vsub.s32 1, %v730
    %v732 = vrot.slane %v657, %v731
    %v733 = vlaneseq
    %v734 = vshrl.u32 %v733, 7
    %v735 = vsub.s32 2, %v734
    %v736 = vrot.slane %v657, %v735
    %v756 = vmul.f32 %v664, %v356
    %v757 = vmul.f32 %v668, %v364
    %v758 = vmul.f32 %v672, %v363
    %v759 = vmul.f32 %v676, %v365
    %v760 = vmul.f32 %v680, %v373
    %v761 = vmul.f32 %v684, %v381
    %v762 = vmul.f32 %v688, %v380
    %v763 = vmul.f32 %v692, %v382
    %v764 = vmul.f32 %v696, %v390
    %v765 = vmul.f32 %v700, %v398
    %v766 = vmul.f32 %v704, %v397
    %v767 = vmul.f32 %v708, %v399
    %v768 = vmul.f32 %v712, %v407
    %v769 = vmul.f32 %v716, %v415
    %v770 = vmul.f32 %v720, %v414
    %v771 = vmul.f32 %v724, %v416
    %v772 = vmul.f32 %v728, %v424
    %v773 = vmul.f32 %v732, %v432
    %v774 = vmul.f32 %v736, %v431
    %v775 = vsub.f32 %v636, %v756
    %v776 = vsub.f32 %v637, %v757
    %v777 = vsub.f32 %v638, %v758
    %v778 = vsub.f32 %v639, %v759
    %v779 = vsub.f32 %v640, %v760
    %v780 = vsub.f32 %v641, %v761
    %v781 = vsub.f32 %v642, %v762
    %v782 = vsub.f32 %v643, %v763
    %v783 = vsub.f32 %v644, %v764
    %v784 = vsub.f32 %v645, %v765
    %v785 = vsub.f32 %v646, %v766
    %v786 = vsub.f32 %v647, %v767
    %v787 = vsub.f32 %v648, %v768
    %v788 = vsub.f32 %v649, %v769
    %v789 = vsub.f32 %v650, %v770
    %v790 = vsub.f32 %v651, %v771
    %v791 = vsub.f32 %v652, %v772
    %v792 = vsub.f32 %v653, %v773
    %v793 = vsub.f32 %v654, %v774
    %v794 = vadd.f32 %v775, %v502
    %v795 = vadd.f32 %v776, %v510
    %v796 = vadd.f32 %v777, %v509
    %v797 = vadd.f32 %v778, %v511
    %v798 = vadd.f32 %v779, %v519
    %v799 = vadd.f32 %v780, %v527
    %v800 = vadd.f32 %v781, %v526
    %v801 = vadd.f32 %v782, %v528
    %v802 = vadd.f32 %v783, %v536
    %v803 = vadd.f32 %v784, %v544
    %v804 = vadd.f32 %v785, %v543
    %v805 = vadd.f32 %v786, %v545
    %v806 = vadd.f32 %v787, %v553
    %v807 = vadd.f32 %v788, %v561
    %v808 = vadd.f32 %v789, %v560
    %v809 = vadd.f32 %v790, %v562
    %v810 = vadd.f32 %v791, %v570
    %v811 = vadd.f32 %v792, %v578
    %v812 = vadd.f32 %v793, %v577
    %v813 = vmax.f32 %v794, 0.0
    %v814 = vmax.f32 %v795, 0.0
    %v815 = vmax.f32 %v796, 0.0
    %v816 = vmax.f32 %v797, 0.0
    %v817 = vmax.f32 %v798, 0.0
    %v818 = vmax.f32 %v799, 0.0
    %v819 = vmax.f32 %v800, 0.0
    %v820 = vmax.f32 %v801, 0.0
    %v821 = vmax.f32 %v802, 0.0
    %v822 = vmax.f32 %v803, 0.0
    %v823 = vmax.f32 %v804, 0.0
    %v824 = vmax.f32 %v805, 0.0
    %v825 = vmax.f32 %v806, 0.0
    %v826 = vmax.f32 %v807, 0.0
    %v827 = vmax.f32 %v808, 0.0
    %v828 = vmax.f32 %v809, 0.0
    %v829 = vmax.f32 %v810, 0.0
    %v830 = vmax.f32 %v811, 0.0
    %v831 = vmax.f32 %v812, 0.0
    %v832 = vrsqrt.pop %v813
    %v833 = vmul.f32 %v813, %v832
    %vm834 = vcmp.eq.f32.partialorder %v813, inf
    %v835 = vsel %vm834, %v813, %v833
    %vm836 = vcmp.eq.f32.partialorder %v813, 0.0
    %v837 = vand.u32 %v813, 2147483648
    %v838 = vsel %vm836, %v837, %v835
    %v839 = vrsqrt.pop %v814
    %v840 = vmul.f32 %v814, %v839
    %vm841 = vcmp.eq.f32.partialorder %v814, inf
    %v842 = vsel %vm841, %v814, %v840
    %vm843 = vcmp.eq.f32.partialorder %v814, 0.0
    %v844 = vand.u32 %v814, 2147483648
    %v845 = vsel %vm843, %v844, %v842
    %v846 = vrsqrt.pop %v815
    %v847 = vmul.f32 %v815, %v846
    %vm848 = vcmp.eq.f32.partialorder %v815, inf
    %v849 = vsel %vm848, %v815, %v847
    %vm850 = vcmp.eq.f32.partialorder %v815, 0.0
    %v851 = vand.u32 %v815, 2147483648
    %v852 = vsel %vm850, %v851, %v849
    %v853 = vrsqrt.pop %v816
    %v854 = vmul.f32 %v816, %v853
    %vm855 = vcmp.eq.f32.partialorder %v816, inf
    %v856 = vsel %vm855, %v816, %v854
    %vm857 = vcmp.eq.f32.partialorder %v816, 0.0
    %v858 = vand.u32 %v816, 2147483648
    %v859 = vsel %vm857, %v858, %v856
    %v860 = vrsqrt.pop %v817
    %v861 = vmul.f32 %v817, %v860
    %vm862 = vcmp.eq.f32.partialorder %v817, inf
    %v863 = vsel %vm862, %v817, %v861
    %vm864 = vcmp.eq.f32.partialorder %v817, 0.0
    %v865 = vand.u32 %v817, 2147483648
    %v866 = vsel %vm864, %v865, %v863
    %v867 = vrsqrt.pop %v818
    %v868 = vmul.f32 %v818, %v867
    %vm869 = vcmp.eq.f32.partialorder %v818, inf
    %v870 = vsel %vm869, %v818, %v868
    %vm871 = vcmp.eq.f32.partialorder %v818, 0.0
    %v872 = vand.u32 %v818, 2147483648
    %v873 = vsel %vm871, %v872, %v870
    %v874 = vrsqrt.pop %v819
    %v875 = vmul.f32 %v819, %v874
    %vm876 = vcmp.eq.f32.partialorder %v819, inf
    %v877 = vsel %vm876, %v819, %v875
    %vm878 = vcmp.eq.f32.partialorder %v819, 0.0
    %v879 = vand.u32 %v819, 2147483648
    %v880 = vsel %vm878, %v879, %v877
    %v881 = vrsqrt.pop %v820
    %v882 = vmul.f32 %v820, %v881
    %vm883 = vcmp.eq.f32.partialorder %v820, inf
    %v884 = vsel %vm883, %v820, %v882
    %vm885 = vcmp.eq.f32.partialorder %v820, 0.0
    %v886 = vand.u32 %v820, 2147483648
    %v887 = vsel %vm885, %v886, %v884
    %v888 = vrsqrt.pop %v821
    %v889 = vmul.f32 %v821, %v888
    %vm890 = vcmp.eq.f32.partialorder %v821, inf
    %v891 = vsel %vm890, %v821, %v889
    %vm892 = vcmp.eq.f32.partialorder %v821, 0.0
    %v893 = vand.u32 %v821, 2147483648
    %v894 = vsel %vm892, %v893, %v891
    %v895 = vrsqrt.pop %v822
    %v896 = vmul.f32 %v822, %v895
    %vm897 = vcmp.eq.f32.partialorder %v822, inf
    %v898 = vsel %vm897, %v822, %v896
    %vm899 = vcmp.eq.f32.partialorder %v822, 0.0
    %v900 = vand.u32 %v822, 2147483648
    %v901 = vsel %vm899, %v900, %v898
    %v902 = vrsqrt.pop %v823
    %v903 = vmul.f32 %v823, %v902
    %vm904 = vcmp.eq.f32.partialorder %v823, inf
    %v905 = vsel %vm904, %v823, %v903
    %vm906 = vcmp.eq.f32.partialorder %v823, 0.0
    %v907 = vand.u32 %v823, 2147483648
    %v908 = vsel %vm906, %v907, %v905
    %v909 = vrsqrt.pop %v824
    %v910 = vmul.f32 %v824, %v909
    %vm911 = vcmp.eq.f32.partialorder %v824, inf
    %v912 = vsel %vm911, %v824, %v910
    %vm913 = vcmp.eq.f32.partialorder %v824, 0.0
    %v914 = vand.u32 %v824, 2147483648
    %v915 = vsel %vm913, %v914, %v912
    %v916 = vrsqrt.pop %v825
    %v917 = vmul.f32 %v825, %v916
    %vm918 = vcmp.eq.f32.partialorder %v825, inf
    %v919 = vsel %vm918, %v825, %v917
    %vm920 = vcmp.eq.f32.partialorder %v825, 0.0
    %v921 = vand.u32 %v825, 2147483648
    %v922 = vsel %vm920, %v921, %v919
    %v923 = vrsqrt.pop %v826
    %v924 = vmul.f32 %v826, %v923
    %vm925 = vcmp.eq.f32.partialorder %v826, inf
    %v926 = vsel %vm925, %v826, %v924
    %vm927 = vcmp.eq.f32.partialorder %v826, 0.0
    %v928 = vand.u32 %v826, 2147483648
    %v929 = vsel %vm927, %v928, %v926
    %v930 = vrsqrt.pop %v827
    %v931 = vmul.f32 %v827, %v930
    %vm932 = vcmp.eq.f32.partialorder %v827, inf
    %v933 = vsel %vm932, %v827, %v931
    %vm934 = vcmp.eq.f32.partialorder %v827, 0.0
    %v935 = vand.u32 %v827, 2147483648
    %v936 = vsel %vm934, %v935, %v933
    %v937 = vrsqrt.pop %v828
    %v938 = vmul.f32 %v828, %v937
    %vm939 = vcmp.eq.f32.partialorder %v828, inf
    %v940 = vsel %vm939, %v828, %v938
    %vm941 = vcmp.eq.f32.partialorder %v828, 0.0
    %v942 = vand.u32 %v828, 2147483648
    %v943 = vsel %vm941, %v942, %v940
    %v944 = vrsqrt.pop %v829
    %v945 = vmul.f32 %v829, %v944
    %vm946 = vcmp.eq.f32.partialorder %v829, inf
    %v947 = vsel %vm946, %v829, %v945
    %vm948 = vcmp.eq.f32.partialorder %v829, 0.0
    %v949 = vand.u32 %v829, 2147483648
    %v950 = vsel %vm948, %v949, %v947
    %v951 = vrsqrt.pop %v830
    %v952 = vmul.f32 %v830, %v951
    %vm953 = vcmp.eq.f32.partialorder %v830, inf
    %v954 = vsel %vm953, %v830, %v952
    %vm955 = vcmp.eq.f32.partialorder %v830, 0.0
    %v956 = vand.u32 %v830, 2147483648
    %v957 = vsel %vm955, %v956, %v954
    %v958 = vrsqrt.pop %v831
    %v959 = vmul.f32 %v831, %v958
    %vm960 = vcmp.eq.f32.partialorder %v831, inf
    %v961 = vsel %vm960, %v831, %v959
    %vm962 = vcmp.eq.f32.partialorder %v831, 0.0
    %v963 = vand.u32 %v831, 2147483648
    %v964 = vsel %vm962, %v963, %v961
    %v968 = vlaneseq
    %v969 = vshrl.u32 %v968, 7
    %v970 = vsub.s32 0, %v969
    %v971 = vrot.slane %v105, %v970
    %v972 = vlaneseq
    %v973 = vshrl.u32 %v972, 7
    %v974 = vsub.s32 1, %v973
    %v975 = vrot.slane %v105, %v974
    %v976 = vlaneseq
    %v977 = vshrl.u32 %v976, 7
    %v978 = vsub.s32 2, %v977
    %v979 = vrot.slane %v105, %v978
    %v980 = vlaneseq
    %v981 = vshrl.u32 %v980, 7
    %v982 = vsub.s32 3, %v981
    %v983 = vrot.slane %v105, %v982
    %v984 = vlaneseq
    %v985 = vshrl.u32 %v984, 7
    %v986 = vsub.s32 4, %v985
    %v987 = vrot.slane %v105, %v986
    %v988 = vlaneseq
    %v989 = vshrl.u32 %v988, 7
    %v990 = vsub.s32 5, %v989
    %v991 = vrot.slane %v105, %v990
    %v992 = vlaneseq
    %v993 = vshrl.u32 %v992, 7
    %v994 = vsub.s32 6, %v993
    %v995 = vrot.slane %v105, %v994
    %v996 = vlaneseq
    %v997 = vshrl.u32 %v996, 7
    %v998 = vsub.s32 7, %v997
    %v999 = vrot.slane %v105, %v998
    %v1000 = vlaneseq
    %v1001 = vshrl.u32 %v1000, 7
    %v1002 = vsub.s32 0, %v1001
    %v1003 = vrot.slane %v106, %v1002
    %v1004 = vlaneseq
    %v1005 = vshrl.u32 %v1004, 7
    %v1006 = vsub.s32 1, %v1005
    %v1007 = vrot.slane %v106, %v1006
    %v1008 = vlaneseq
    %v1009 = vshrl.u32 %v1008, 7
    %v1010 = vsub.s32 2, %v1009
    %v1011 = vrot.slane %v106, %v1010
    %v1012 = vlaneseq
    %v1013 = vshrl.u32 %v1012, 7
    %v1014 = vsub.s32 3, %v1013
    %v1015 = vrot.slane %v106, %v1014
    %v1016 = vlaneseq
    %v1017 = vshrl.u32 %v1016, 7
    %v1018 = vsub.s32 4, %v1017
    %v1019 = vrot.slane %v106, %v1018
    %v1020 = vlaneseq
    %v1021 = vshrl.u32 %v1020, 7
    %v1022 = vsub.s32 5, %v1021
    %v1023 = vrot.slane %v106, %v1022
    %v1024 = vlaneseq
    %v1025 = vshrl.u32 %v1024, 7
    %v1026 = vsub.s32 6, %v1025
    %v1027 = vrot.slane %v106, %v1026
    %v1028 = vlaneseq
    %v1029 = vshrl.u32 %v1028, 7
    %v1030 = vsub.s32 7, %v1029
    %v1031 = vrot.slane %v106, %v1030
    %v1032 = vlaneseq
    %v1033 = vshrl.u32 %v1032, 7
    %v1034 = vsub.s32 0, %v1033
    %v1035 = vrot.slane %v107, %v1034
    %v1036 = vlaneseq
    %v1037 = vshrl.u32 %v1036, 7
    %v1038 = vsub.s32 1, %v1037
    %v1039 = vrot.slane %v107, %v1038
    %v1040 = vlaneseq
    %v1041 = vshrl.u32 %v1040, 7
    %v1042 = vsub.s32 2, %v1041
    %v1043 = vrot.slane %v107, %v1042
    %v1063 = vmul.f32 %v971, %v356
    %v1064 = vmul.f32 %v975, %v364
    %v1065 = vmul.f32 %v979, %v363
    %v1066 = vmul.f32 %v983, %v365
    %v1067 = vmul.f32 %v987, %v373
    %v1068 = vmul.f32 %v991, %v381
    %v1069 = vmul.f32 %v995, %v380
    %v1070 = vmul.f32 %v999, %v382
    %v1071 = vmul.f32 %v1003, %v390
    %v1072 = vmul.f32 %v1007, %v398
    %v1073 = vmul.f32 %v1011, %v397
    %v1074 = vmul.f32 %v1015, %v399
    %v1075 = vmul.f32 %v1019, %v407
    %v1076 = vmul.f32 %v1023, %v415
    %v1077 = vmul.f32 %v1027, %v414
    %v1078 = vmul.f32 %v1031, %v416
    %v1079 = vmul.f32 %v1035, %v424
    %v1080 = vmul.f32 %v1039, %v432
    %v1081 = vmul.f32 %v1043, %v431
    %v1082 = vsub.f32 %v1063, %v502
    %v1083 = vsub.f32 %v1064, %v510
    %v1084 = vsub.f32 %v1065, %v509
    %v1085 = vsub.f32 %v1066, %v511
    %v1086 = vsub.f32 %v1067, %v519
    %v1087 = vsub.f32 %v1068, %v527
    %v1088 = vsub.f32 %v1069, %v526
    %v1089 = vsub.f32 %v1070, %v528
    %v1090 = vsub.f32 %v1071, %v536
    %v1091 = vsub.f32 %v1072, %v544
    %v1092 = vsub.f32 %v1073, %v543
    %v1093 = vsub.f32 %v1074, %v545
    %v1094 = vsub.f32 %v1075, %v553
    %v1095 = vsub.f32 %v1076, %v561
    %v1096 = vsub.f32 %v1077, %v560
    %v1097 = vsub.f32 %v1078, %v562
    %v1098 = vsub.f32 %v1079, %v570
    %v1099 = vsub.f32 %v1080, %v578
    %v1100 = vsub.f32 %v1081, %v577
    %v1101 = vsub.f32 %v1082, %v838
    %v1102 = vsub.f32 %v1083, %v845
    %v1103 = vsub.f32 %v1084, %v852
    %v1104 = vsub.f32 %v1085, %v859
    %v1105 = vsub.f32 %v1086, %v866
    %v1106 = vsub.f32 %v1087, %v873
    %v1107 = vsub.f32 %v1088, %v880
    %v1108 = vsub.f32 %v1089, %v887
    %v1109 = vsub.f32 %v1090, %v894
    %v1110 = vsub.f32 %v1091, %v901
    %v1111 = vsub.f32 %v1092, %v908
    %v1112 = vsub.f32 %v1093, %v915
    %v1113 = vsub.f32 %v1094, %v922
    %v1114 = vsub.f32 %v1095, %v929
    %v1115 = vsub.f32 %v1096, %v936
    %v1116 = vsub.f32 %v1097, %v943
    %v1117 = vsub.f32 %v1098, %v950
    %v1118 = vsub.f32 %v1099, %v957
    %v1119 = vsub.f32 %v1100, %v964
    %v1120 = vsub.f32 %v238, 1.0
    %v1121 = vsub.f32 %v239, 1.0
    %v1122 = vsub.f32 %v240, 1.0
    %v1123 = vsub.f32 %v241, 1.0
    %v1124 = vsub.f32 %v242, 1.0
    %v1125 = vadd.f32 %v1120, 1e-10
    %v1126 = vadd.f32 %v1121, 1e-10
    %v1127 = vadd.f32 %v1122, 1e-10
    %v1128 = vadd.f32 %v1123, 1e-10
    %v1129 = vadd.f32 %v1124, 1e-10
    %v1135 = vcombine.high %v1125, %v1125
    %v1137 = vunpack.c.l.s4 1983009808
    %v1138 = vunpack.c.0.s8 %v1137
    %v1139 = vlaneseq
    %v1140 = vshrl.u32 %v1139, 7
    %v1141 = vsub.s32 %v1138, %v1140
    %v1142 = vrot.slane %v1125, %v1141
    %v1144 = vunpack.c.l.s4 1983009808
    %v1145 = vunpack.c.0.s8 %v1144
    %v1146 = vlaneseq
    %v1147 = vshrl.u32 %v1146, 7
    %v1148 = vsub.s32 %v1145, %v1147
    %v1149 = vrot.slane %v1135, %v1148
    %v1150 = vcombine.high %v1142, %v1142
    %v1151 = vcombine.high %v1149, %v1149
    %v1152 = vcombine.high %v1126, %v1126
    %v1154 = vunpack.c.l.s4 1983009808
    %v1155 = vunpack.c.0.s8 %v1154
    %v1156 = vlaneseq
    %v1157 = vshrl.u32 %v1156, 7
    %v1158 = vsub.s32 %v1155, %v1157
    %v1159 = vrot.slane %v1126, %v1158
    %v1161 = vunpack.c.l.s4 1983009808
    %v1162 = vunpack.c.0.s8 %v1161
    %v1163 = vlaneseq
    %v1164 = vshrl.u32 %v1163, 7
    %v1165 = vsub.s32 %v1162, %v1164
    %v1166 = vrot.slane %v1152, %v1165
    %v1167 = vcombine.high %v1159, %v1159
    %v1168 = vcombine.high %v1166, %v1166
    %v1169 = vcombine.high %v1127, %v1127
    %v1171 = vunpack.c.l.s4 1983009808
    %v1172 = vunpack.c.0.s8 %v1171
    %v1173 = vlaneseq
    %v1174 = vshrl.u32 %v1173, 7
    %v1175 = vsub.s32 %v1172, %v1174
    %v1176 = vrot.slane %v1127, %v1175
    %v1178 = vunpack.c.l.s4 1983009808
    %v1179 = vunpack.c.0.s8 %v1178
    %v1180 = vlaneseq
    %v1181 = vshrl.u32 %v1180, 7
    %v1182 = vsub.s32 %v1179, %v1181
    %v1183 = vrot.slane %v1169, %v1182
    %v1184 = vcombine.high %v1176, %v1176
    %v1185 = vcombine.high %v1183, %v1183
    %v1186 = vcombine.high %v1128, %v1128
    %v1188 = vunpack.c.l.s4 1983009808
    %v1189 = vunpack.c.0.s8 %v1188
    %v1190 = vlaneseq
    %v1191 = vshrl.u32 %v1190, 7
    %v1192 = vsub.s32 %v1189, %v1191
    %v1193 = vrot.slane %v1128, %v1192
    %v1195 = vunpack.c.l.s4 1983009808
    %v1196 = vunpack.c.0.s8 %v1195
    %v1197 = vlaneseq
    %v1198 = vshrl.u32 %v1197, 7
    %v1199 = vsub.s32 %v1196, %v1198
    %v1200 = vrot.slane %v1186, %v1199
    %v1201 = vcombine.high %v1193, %v1193
    %v1202 = vcombine.high %v1200, %v1200
    %v1203 = vcombine.high %v1129, %v1129
    %v1205 = vunpack.c.l.s4 1983009808
    %v1206 = vunpack.c.0.s8 %v1205
    %v1207 = vlaneseq
    %v1208 = vshrl.u32 %v1207, 7
    %v1209 = vsub.s32 %v1206, %v1208
    %v1210 = vrot.slane %v1129, %v1209
    %v1212 = vunpack.c.l.s4 1983009808
    %v1213 = vunpack.c.0.s8 %v1212
    %v1214 = vlaneseq
    %v1215 = vshrl.u32 %v1214, 7
    %v1216 = vsub.s32 %v1213, %v1215
    %v1217 = vrot.slane %v1203, %v1216
    %v1218 = vcombine.high %v1210, %v1210
    %v1238 = vrcp.pop %v1142
    %v1239 = vmul.f32 %v1101, %v1238
    %v1240 = vrcp.pop %v1150
    %v1241 = vmul.f32 %v1102, %v1240
    %v1242 = vrcp.pop %v1149
    %v1243 = vmul.f32 %v1103, %v1242
    %v1244 = vrcp.pop %v1151
    %v1245 = vmul.f32 %v1104, %v1244
    %v1246 = vrcp.pop %v1159
    %v1247 = vmul.f32 %v1105, %v1246
    %v1248 = vrcp.pop %v1167
    %v1249 = vmul.f32 %v1106, %v1248
    %v1250 = vrcp.pop %v1166
    %v1251 = vmul.f32 %v1107, %v1250
    %v1252 = vrcp.pop %v1168
    %v1253 = vmul.f32 %v1108, %v1252
    %v1254 = vrcp.pop %v1176
    %v1255 = vmul.f32 %v1109, %v1254
    %v1256 = vrcp.pop %v1184
    %v1257 = vmul.f32 %v1110, %v1256
    %v1258 = vrcp.pop %v1183
    %v1259 = vmul.f32 %v1111, %v1258
    %v1260 = vrcp.pop %v1185
    %v1261 = vmul.f32 %v1112, %v1260
    %v1262 = vrcp.pop %v1193
    %v1263 = vmul.f32 %v1113, %v1262
    %v1264 = vrcp.pop %v1201
    %v1265 = vmul.f32 %v1114, %v1264
    %v1266 = vrcp.pop %v1200
    %v1267 = vmul.f32 %v1115, %v1266
    %v1268 = vrcp.pop %v1202
    %v1269 = vmul.f32 %v1116, %v1268
    %v1270 = vrcp.pop %v1210
    %v1271 = vmul.f32 %v1117, %v1270
    %v1272 = vrcp.pop %v1218
    %v1273 = vmul.f32 %v1118, %v1272
    %v1274 = vrcp.pop %v1217
    %v1275 = vmul.f32 %v1119, %v1274
    %v1276 = vadd.f32 %v1239, 1.0
    %v1277 = vadd.f32 %v1241, 1.0
    %v1278 = vadd.f32 %v1243, 1.0
    %v1279 = vadd.f32 %v1245, 1.0
    %v1280 = vadd.f32 %v1247, 1.0
    %v1281 = vadd.f32 %v1249, 1.0
    %v1282 = vadd.f32 %v1251, 1.0
    %v1283 = vadd.f32 %v1253, 1.0
    %v1284 = vadd.f32 %v1255, 1.0
    %v1285 = vadd.f32 %v1257, 1.0
    %v1286 = vadd.f32 %v1259, 1.0
    %v1287 = vadd.f32 %v1261, 1.0
    %v1288 = vadd.f32 %v1263, 1.0
    %v1289 = vadd.f32 %v1265, 1.0
    %v1290 = vadd.f32 %v1267, 1.0
    %v1291 = vadd.f32 %v1269, 1.0
    %v1292 = vadd.f32 %v1271, 1.0
    %v1293 = vadd.f32 %v1273, 1.0
    %v1294 = vadd.f32 %v1275, 1.0
    %v1295 = vrcp.pop %v1276
    %v1296 = vmul.f32 1.0, %v1295
    %v1297 = vrcp.pop %v1277
    %v1298 = vmul.f32 1.0, %v1297
    %v1299 = vrcp.pop %v1278
    %v1300 = vmul.f32 1.0, %v1299
    %v1301 = vrcp.pop %v1279
    %v1302 = vmul.f32 1.0, %v1301
    %v1303 = vrcp.pop %v1280
    %v1304 = vmul.f32 1.0, %v1303
    %v1305 = vrcp.pop %v1281
    %v1306 = vmul.f32 1.0, %v1305
    %v1307 = vrcp.pop %v1282
    %v1308 = vmul.f32 1.0, %v1307
    %v1309 = vrcp.pop %v1283
    %v1310 = vmul.f32 1.0, %v1309
    %v1311 = vrcp.pop %v1284
    %v1312 = vmul.f32 1.0, %v1311
    %v1313 = vrcp.pop %v1285
    %v1314 = vmul.f32 1.0, %v1313
    %v1315 = vrcp.pop %v1286
    %v1316 = vmul.f32 1.0, %v1315
    %v1317 = vrcp.pop %v1287
    %v1318 = vmul.f32 1.0, %v1317
    %v1319 = vrcp.pop %v1288
    %v1320 = vmul.f32 1.0, %v1319
    %v1321 = vrcp.pop %v1289
    %v1322 = vmul.f32 1.0, %v1321
    %v1323 = vrcp.pop %v1290
    %v1324 = vmul.f32 1.0, %v1323
    %v1325 = vrcp.pop %v1291
    %v1326 = vmul.f32 1.0, %v1325
    %v1327 = vrcp.pop %v1292
    %v1328 = vmul.f32 1.0, %v1327
    %v1329 = vrcp.pop %v1293
    %v1330 = vmul.f32 1.0, %v1329
    %v1331 = vrcp.pop %v1294
    %v1332 = vmul.f32 1.0, %v1331
    %vm1333 = vcmp.lt.f32.partialorder %v1296, 0.2
    %vm1334 = vcmp.lt.f32.partialorder %v1298, 0.2
    %vm1335 = vcmp.lt.f32.partialorder %v1300, 0.2
    %vm1336 = vcmp.lt.f32.partialorder %v1302, 0.2
    %vm1337 = vcmp.lt.f32.partialorder %v1304, 0.2
    %vm1338 = vcmp.lt.f32.partialorder %v1306, 0.2
    %vm1339 = vcmp.lt.f32.partialorder %v1308, 0.2
    %vm1340 = vcmp.lt.f32.partialorder %v1310, 0.2
    %vm1341 = vcmp.lt.f32.partialorder %v1312, 0.2
    %vm1342 = vcmp.lt.f32.partialorder %v1314, 0.2
    %vm1343 = vcmp.lt.f32.partialorder %v1316, 0.2
    %vm1344 = vcmp.lt.f32.partialorder %v1318, 0.2
    %vm1345 = vcmp.lt.f32.partialorder %v1320, 0.2
    %vm1346 = vcmp.lt.f32.partialorder %v1322, 0.2
    %vm1347 = vcmp.lt.f32.partialorder %v1324, 0.2
    %vm1348 = vcmp.lt.f32.partialorder %v1326, 0.2
    %vm1349 = vcmp.lt.f32.partialorder %v1328, 0.2
    %vm1350 = vcmp.lt.f32.partialorder %v1330, 0.2
    %vm1351 = vcmp.lt.f32.partialorder %v1332, 0.2
    %v1352 = vsel %vm1333, 1, 0
    %v1353 = vsel %vm1334, 1, 0
    %v1354 = vsel %vm1335, 1, 0
    %v1355 = vsel %vm1336, 1, 0
    %v1356 = vsel %vm1337, 1, 0
    %v1357 = vsel %vm1338, 1, 0
    %v1358 = vsel %vm1339, 1, 0
    %v1359 = vsel %vm1340, 1, 0
    %v1360 = vsel %vm1341, 1, 0
    %v1361 = vsel %vm1342, 1, 0
    %v1362 = vsel %vm1343, 1, 0
    %v1363 = vsel %vm1344, 1, 0
    %v1364 = vsel %vm1345, 1, 0
    %v1365 = vsel %vm1346, 1, 0
    %v1366 = vsel %vm1347, 1, 0
    %v1367 = vsel %vm1348, 1, 0
    %v1368 = vsel %vm1349, 1, 0
    %v1369 = vsel %vm1350, 1, 0
    %v1370 = vsel %vm1351, 1, 0
    %v1371 = vcvt.s32.f32 %v1352
    %v1372 = vcvt.s32.f32 %v1353
    %v1373 = vcvt.s32.f32 %v1354
    %v1374 = vcvt.s32.f32 %v1355
    %v1375 = vcvt.s32.f32 %v1356
    %v1376 = vcvt.s32.f32 %v1357
    %v1377 = vcvt.s32.f32 %v1358
    %v1378 = vcvt.s32.f32 %v1359
    %v1379 = vcvt.s32.f32 %v1360
    %v1380 = vcvt.s32.f32 %v1361
    %v1381 = vcvt.s32.f32 %v1362
    %v1382 = vcvt.s32.f32 %v1363
    %v1383 = vcvt.s32.f32 %v1364
    %v1384 = vcvt.s32.f32 %v1365
    %v1385 = vcvt.s32.f32 %v1366
    %v1386 = vcvt.s32.f32 %v1367
    %v1387 = vcvt.s32.f32 %v1368
    %v1388 = vcvt.s32.f32 %v1369
    %v1389 = vcvt.s32.f32 %v1370
    %v1409 = vcombine.low %v1371, %v1372
    %v1410 = vcombine.low %v1373, %v1374
    %v1412 = vunpack.c.l.s4 1983009808
    %v1413 = vunpack.c.0.s8 %v1412
    %v1414 = vlaneseq
    %v1415 = vshrl.u32 %v1414, 7
    %v1416 = vsub.s32 %v1413, %v1415
    %v1417 = vrot.slane %v1409, %v1416
    %v1419 = vunpack.c.l.s4 1983009808
    %v1420 = vunpack.c.0.s8 %v1419
    %v1421 = vlaneseq
    %v1422 = vshrl.u32 %v1421, 7
    %v1423 = vsub.s32 %v1420, %v1422
    %v1424 = vrot.slane %v1410, %v1423
    %v1425 = vcombine.low %v1417, %v1424
    %v1426 = vcombine.low %v1375, %v1376
    %v1427 = vcombine.low %v1377, %v1378
    %v1429 = vunpack.c.l.s4 1983009808
    %v1430 = vunpack.c.0.s8 %v1429
    %v1431 = vlaneseq
    %v1432 = vshrl.u32 %v1431, 7
    %v1433 = vsub.s32 %v1430, %v1432
    %v1434 = vrot.slane %v1426, %v1433
    %v1436 = vunpack.c.l.s4 1983009808
    %v1437 = vunpack.c.0.s8 %v1436
    %v1438 = vlaneseq
    %v1439 = vshrl.u32 %v1438, 7
    %v1440 = vsub.s32 %v1437, %v1439
    %v1441 = vrot.slane %v1427, %v1440
    %v1442 = vcombine.low %v1434, %v1441
    %v1443 = vcombine.low %v1379, %v1380
    %v1444 = vcombine.low %v1381, %v1382
    %v1446 = vunpack.c.l.s4 1983009808
    %v1447 = vunpack.c.0.s8 %v1446
    %v1448 = vlaneseq
    %v1449 = vshrl.u32 %v1448, 7
    %v1450 = vsub.s32 %v1447, %v1449
    %v1451 = vrot.slane %v1443, %v1450
    %v1453 = vunpack.c.l.s4 1983009808
    %v1454 = vunpack.c.0.s8 %v1453
    %v1455 = vlaneseq
    %v1456 = vshrl.u32 %v1455, 7
    %v1457 = vsub.s32 %v1454, %v1456
    %v1458 = vrot.slane %v1444, %v1457
    %v1459 = vcombine.low %v1451, %v1458
    %v1460 = vcombine.low %v1383, %v1384
    %v1461 = vcombine.low %v1385, %v1386
    %v1463 = vunpack.c.l.s4 1983009808
    %v1464 = vunpack.c.0.s8 %v1463
    %v1465 = vlaneseq
    %v1466 = vshrl.u32 %v1465, 7
    %v1467 = vsub.s32 %v1464, %v1466
    %v1468 = vrot.slane %v1460, %v1467
    %v1470 = vunpack.c.l.s4 1983009808
    %v1471 = vunpack.c.0.s8 %v1470
    %v1472 = vlaneseq
    %v1473 = vshrl.u32 %v1472, 7
    %v1474 = vsub.s32 %v1471, %v1473
    %v1475 = vrot.slane %v1461, %v1474
    %v1476 = vcombine.low %v1468, %v1475
    %v1477 = vcombine.low %v1387, %v1388
    %v1479 = vunpack.c.l.s4 1983009808
    %v1480 = vunpack.c.0.s8 %v1479
    %v1481 = vlaneseq
    %v1482 = vshrl.u32 %v1481, 7
    %v1483 = vsub.s32 %v1480, %v1482
    %v1484 = vrot.slane %v1477, %v1483
    %v1486 = vunpack.c.l.s4 1983009808
    %v1487 = vunpack.c.0.s8 %v1486
    %v1488 = vlaneseq
    %v1489 = vshrl.u32 %v1488, 7
    %v1490 = vsub.s32 %v1487, %v1489
    %v1491 = vrot.slane %v1389, %v1490
    %v1492 = vcombine.low %v1484, %v1491
    %v1498 = vmul.f32 %v85, %v1425
    %v1499 = vmul.f32 %v86, %v1442
    %v1500 = vmul.f32 %v87, %v1459
    %v1501 = vmul.f32 %v88, %v1476
    %v1502 = vmul.f32 %v89, %v1492
    %1503 = vst [vmem:[#allocation11] sm:$0xff] %v1498
    %1504 = vst [vmem:[#allocation11 + $0x8] sm:$0xff] %v1499
    %1505 = vst [vmem:[#allocation11 + $0x10] sm:$0xff] %v1500
    %1506 = vst [vmem:[#allocation11 + $0x18] sm:$0xff] %v1501
    %vm1507 = vcmask 1041408
    %vm1508 = vcmask 1043458
    %vm1509 = vmor %vm1508, %vm1507
    %vm1510 = vcmask 70660
    %vm1511 = vmor %vm1510, %vm1509
    %1512 = vst.msk [vmem:[#allocation11 + $0x20] sm:$0x3f] %vm1511, %v1502
    %v1513 = vmul.f32 %v90, %v1425
    %v1514 = vmul.f32 %v91, %v1442
    %v1515 = vmul.f32 %v92, %v1459
    %v1516 = vmul.f32 %v93, %v1476
    %v1517 = vmul.f32 %v94, %v1492
    %1518 = vst [vmem:[#allocation12] sm:$0xff] %v1513
    %1519 = vst [vmem:[#allocation12 + $0x8] sm:$0xff] %v1514
    %1520 = vst [vmem:[#allocation12 + $0x10] sm:$0xff] %v1515
    %1521 = vst [vmem:[#allocation12 + $0x18] sm:$0xff] %v1516
    %1522 = vst.msk [vmem:[#allocation12 + $0x20] sm:$0x3f] %vm1511, %v1517
    %v1523 = vmul.f32 %v95, %v1425
    %v1524 = vmul.f32 %v96, %v1442
    %v1525 = vmul.f32 %v97, %v1459
    %v1526 = vmul.f32 %v98, %v1476
    %v1527 = vmul.f32 %v99, %v1492
    %1528 = vst [vmem:[#allocation14] sm:$0xff] %v1523
    %1529 = vst [vmem:[#allocation14 + $0x8] sm:$0xff] %v1524
    %1530 = vst [vmem:[#allocation14 + $0x10] sm:$0xff] %v1525
    %1531 = vst [vmem:[#allocation14 + $0x18] sm:$0xff] %v1526
    %1532 = vst.msk [vmem:[#allocation14 + $0x20] sm:$0x3f] %vm1511, %v1527
    %v1533 = vmul.f32 %v100, %v1425
    %v1534 = vmul.f32 %v101, %v1442
    %v1535 = vmul.f32 %v102, %v1459
    %v1536 = vmul.f32 %v103, %v1476
    %v1537 = vmul.f32 %v104, %v1492
    %1538 = vst [vmem:[#allocation15] sm:$0xff] %v1533
    %1539 = vst [vmem:[#allocation15 + $0x8] sm:$0xff] %v1534
    %1540 = vst [vmem:[#allocation15 + $0x10] sm:$0xff] %v1535
    %1541 = vst [vmem:[#allocation15 + $0x18] sm:$0xff] %v1536
    %1542 = vst.msk [vmem:[#allocation15 + $0x20] sm:$0x3f] %vm1511, %v1537
    // Predicated region
    $region42: #{tpu_custom_call.1} parent=1 // pred_check
      _
    $region43: #{tpu_custom_call.1} parent=1 // pred_check_branch
      %1544 = sbr.rel (0) target = $region45
    $region44: #{tpu_custom_call.1} parent=1 // pred_region
      %s1546 = ssub.s32 608, 608
      %1547 = vsyncadd [#allocation4], %s1546
      %s1549 = sshll.u32 [#allocation11], 4
      %s1550 = int_to_ptr.vmem [resolvable:$true] %s1549
      %1552 = dma.vmem_to_hbm [thread:$0]  %s1550, 608, %s5, [#allocation4]
    $region45: #{tpu_custom_call.1} parent=1 // pred_fallthru
      _
    // Predicated region
    $region46: #{tpu_custom_call.1} parent=1 // pred_check
      _
    $region47: #{tpu_custom_call.1} parent=1 // pred_check_branch
      %1554 = sbr.rel (0) target = $region49
    $region48: #{tpu_custom_call.1} parent=1 // pred_region
      %s1556 = ssub.s32 608, 608
      %1557 = vsyncadd [#allocation13], %s1556
      %s1559 = sshll.u32 [#allocation12], 4
      %s1560 = int_to_ptr.vmem [resolvable:$true] %s1559
      %1562 = dma.vmem_to_hbm [thread:$0]  %s1560, 608, %s6, [#allocation13]
    $region49: #{tpu_custom_call.1} parent=1 // pred_fallthru
      _
    // Predicated region
    $region50: #{tpu_custom_call.1} parent=1 // pred_check
      _
    $region51: #{tpu_custom_call.1} parent=1 // pred_check_branch
      %1564 = sbr.rel (0) target = $region53
    $region52: #{tpu_custom_call.1} parent=1 // pred_region
      %s1566 = ssub.s32 608, 608
      %1567 = vsyncadd [#allocation13], %s1566
      %s1569 = sshll.u32 [#allocation14], 4
      %s1570 = int_to_ptr.vmem [resolvable:$true] %s1569
      %1572 = dma.vmem_to_hbm [thread:$0]  %s1570, 608, %s7, [#allocation13]
    $region53: #{tpu_custom_call.1} parent=1 // pred_fallthru
      _
    // Predicated region
    $region54: #{tpu_custom_call.1} parent=1 // pred_check
      _
    $region55: #{tpu_custom_call.1} parent=1 // pred_check_branch
      %1574 = sbr.rel (0) target = $region57
    $region56: #{tpu_custom_call.1} parent=1 // pred_region
      %s1576 = ssub.s32 608, 608
      %1577 = vsyncadd [#allocation16], %s1576
      %s1579 = sshll.u32 [#allocation15], 4
      %s1580 = int_to_ptr.vmem [resolvable:$true] %s1579
      %1582 = dma.vmem_to_hbm [thread:$0]  %s1580, 608, %s8, [#allocation16]
    $region57: #{tpu_custom_call.1} parent=1 // pred_fallthru
      _
    // Predicated region
    $region58: #{tpu_custom_call.1} parent=1 // pred_check
      _
    $region59: #{tpu_custom_call.1} parent=1 // pred_check_branch
      %1584 = sbr.rel (0) target = $region61
    $region60: #{tpu_custom_call.1} parent=1 // pred_region
      %1585 = dma.done [#allocation4], 608
    $region61: #{tpu_custom_call.1} parent=1 // pred_fallthru
      _
    // Predicated region
    $region62: #{tpu_custom_call.1} parent=1 // pred_check
      _
    $region63: #{tpu_custom_call.1} parent=1 // pred_check_branch
      %1587 = sbr.rel (0) target = $region65
    $region64: #{tpu_custom_call.1} parent=1 // pred_region
      %1588 = dma.done [#allocation13], 608
    $region65: #{tpu_custom_call.1} parent=1 // pred_fallthru
      _
    // Predicated region
    $region66: #{tpu_custom_call.1} parent=1 // pred_check
      _
    $region67: #{tpu_custom_call.1} parent=1 // pred_check_branch
      %1590 = sbr.rel (0) target = $region69
    $region68: #{tpu_custom_call.1} parent=1 // pred_region
      %1591 = dma.done [#allocation13], 608
    $region69: #{tpu_custom_call.1} parent=1 // pred_fallthru
      _
    // Predicated region
    $region70: #{tpu_custom_call.1} parent=1 // pred_check
      _
    $region71: #{tpu_custom_call.1} parent=1 // pred_check_branch
      %1593 = sbr.rel (0) target = $region73
    $region72: #{tpu_custom_call.1} parent=1 // pred_region
      %1594 = dma.done [#allocation16], 608
    $region73: #{tpu_custom_call.1} parent=1 // pred_fallthru
      _
    %1595 = vsyncpa [#allocation3], 1
    %1596 = vsyncpa [#allocation6], 1
    %1597 = vsyncpa [#allocation9], 1
    %1598 = vsyncpa [#allocation4], 1
    %1599 = vsyncpa [#allocation13], 1
    %1600 = vsyncpa [#allocation16], 1

</llo_original>
